<compile_context>
chip_gen: v7x
topology: tpu7x:2x2x1
jax: 0.10.0
libtpu: 0.0.40
codegen_flags: <defaults>
</compile_context>

<pallas_src>
import jax
import jax.numpy as jnp
from jax.experimental import pallas as pl
from jax.experimental.pallas import tpu as pltpu

_LANE = 128
_SUBLANE = 8
_VMEM_BUDGET = 24 * 1024 * 1024   # pipelined working-set cap (v7x-safe)
_VMEM_LIMIT = 48 << 20            # explicit scoped-VMEM limit (< v7x 64 MiB phys)


def _round_up(x, m):
    return (x + m - 1) // m * m


def _pick_tile(dim, req, align):
    """Largest legal tile <= req that divides `dim`, else the full dim.

    Never forces padding of the array: the tile either divides the dimension
    exactly or equals the full dimension (both are layout-legal)."""
    if dim <= req:
        return dim
    if dim % align != 0:
        return dim
    t = (req // align) * align
    while t >= align:
        if dim % t == 0:
            return t
        t -= align
    return dim


# ---------------------------------------------------------------------------
# Kernels
# ---------------------------------------------------------------------------

def _blend_kernel(alpha_ref, wo_ref, wa_ref, o_ref):
    """W_blend = (1 - alpha) * W_orig + alpha * W_approx (one-shot pre-pass)."""
    a = alpha_ref[0]
    o_ref[...] = ((1.0 - a) * wo_ref[...].astype(jnp.float32)
                  + a * wa_ref[...].astype(jnp.float32)).astype(o_ref.dtype)


def _matmul_kernel(x_ref, w_ref, o_ref, acc_ref):
    """Standard tiled x @ W with resident f32 accumulator over K."""
    k = pl.program_id(2)

    @pl.when(k == 0)
    def _():
        acc_ref[...] = jnp.zeros_like(acc_ref)

    acc_ref[...] += jnp.dot(x_ref[...], w_ref[...],
                            preferred_element_type=jnp.float32)

    @pl.when(k == pl.num_programs(2) - 1)
    def _():
        o_ref[...] = acc_ref[...].astype(o_ref.dtype)


def _fused_kernel(alpha_ref, x_ref, wo_ref, wa_ref, o_ref, acc_ref):
    """Blend the weight tile on the VPU, then a SINGLE MXU matmul per tile.

    Used only when there are few M tiles (<= 2), where streaming both weight
    matrices once is already near-optimal."""
    k = pl.program_id(2)

    @pl.when(k == 0)
    def _():
        acc_ref[...] = jnp.zeros_like(acc_ref)

    a = alpha_ref[0]
    w = ((1.0 - a) * wo_ref[...].astype(jnp.float32)
         + a * wa_ref[...].astype(jnp.float32)).astype(x_ref.dtype)
    acc_ref[...] += jnp.dot(x_ref[...], w, preferred_element_type=jnp.float32)

    @pl.when(k == pl.num_programs(2) - 1)
    def _():
        o_ref[...] = acc_ref[...].astype(o_ref.dtype)


# ---------------------------------------------------------------------------
# Wrappers
# ---------------------------------------------------------------------------

def _blend_weights(w_orig, w_approx, alpha):
    K, N = w_orig.shape
    bn = _pick_tile(N, 1024, _LANE)
    bk = _pick_tile(K, 256, _SUBLANE)
    alpha_arr = jnp.asarray([alpha], dtype=jnp.float32)
    return pl.pallas_call(
        _blend_kernel,
        out_shape=jax.ShapeDtypeStruct((K, N), w_orig.dtype),
        grid=(K // bk, N // bn),
        in_specs=[
            pl.BlockSpec(memory_space=pltpu.SMEM),
            pl.BlockSpec((bk, bn), lambda i, j: (i, j)),
            pl.BlockSpec((bk, bn), lambda i, j: (i, j)),
        ],
        out_specs=pl.BlockSpec((bk, bn), lambda i, j: (i, j)),
        compiler_params=pltpu.CompilerParams(
            dimension_semantics=("parallel", "parallel"),
            vmem_limit_bytes=_VMEM_LIMIT,
        ),
    )(alpha_arr, w_orig, w_approx)


def interpolator_forward(x, w_orig, w_approx, alpha, *, tm=512, tn=512, tk=512):
    """(1 - alpha) * x @ w_orig + alpha * x @ w_approx.

    x: (M, K); w_orig, w_approx: (K, N) -- already transposed vs torch weights.
    For best MXU/HBM throughput pass bf16 operands (f32 accumulation is kept).
    """
    M, K = x.shape
    Kw, N = w_orig.shape
    assert Kw == K and w_approx.shape == (K, N), (x.shape, w_orig.shape, w_approx.shape)

    out_dtype = x.dtype
    itemsize = jnp.dtype(x.dtype).itemsize

    # Tiles: never pad the (large) weight matrices — tn/tk divide N/K exactly
    # or equal the full dimension.  Only x / out are padded along M.
    tn = _pick_tile(N, tn, _LANE)
    tk = _pick_tile(K, tk, _LANE)
    tm = min(tm, _round_up(M, _SUBLANE))

    # Keep the double-buffered working set inside a v7x-safe VMEM budget
    # (2 bufs x (x tile + 2 weight tiles + out tile) + f32 accumulator).
    def working_set(tm_):
        return 2 * (tm_ * tk + 2 * tk * tn + tm_ * tn) * itemsize + tm_ * tn * 4

    while working_set(tm) > _VMEM_BUDGET and tm > _SUBLANE:
        tm = max(_SUBLANE, _round_up(tm // 2, _SUBLANE))

    Mp = _round_up(M, tm)

    # v7x has 2 TensorCores: keep >= 2 blocks on the "parallel" axes when easy.
    if Mp // tm == 1 and N // tn == 1 and tn % (2 * _LANE) == 0:
        tn //= 2

    grid_m, grid_n, grid_k = Mp // tm, N // tn, K // tk
    grid = (grid_m, grid_n, grid_k)          # K innermost: reduction axis

    xp = jnp.pad(x, ((0, Mp - M), (0, 0))) if Mp != M else x

    # Pre-blend when several M tiles would re-stream BOTH weight matrices.
    use_preblend = grid_m > 2

    compiler_params = pltpu.CompilerParams(
        dimension_semantics=("parallel", "parallel", "arbitrary"),
        vmem_limit_bytes=_VMEM_LIMIT,
    )

    if use_preblend:
        w_blend = _blend_weights(w_orig, w_approx, alpha)
        cost = pl.CostEstimate(
            flops=2 * Mp * K * N,
            transcendentals=0,
            bytes_accessed=(Mp * K * grid_n + K * N * grid_m + Mp * N) * itemsize,
        )
        out = pl.pallas_call(
            _matmul_kernel,
            out_shape=jax.ShapeDtypeStruct((Mp, N), out_dtype),
            grid=grid,
            in_specs=[
                pl.BlockSpec((tm, tk), lambda i, j, k: (i, k)),   # x tile
                pl.BlockSpec((tk, tn), lambda i, j, k: (k, j)),   # W_blend tile
            ],
            out_specs=pl.BlockSpec((tm, tn), lambda i, j, k: (i, j)),
            scratch_shapes=[pltpu.VMEM((tm, tn), jnp.float32)],
            compiler_params=compiler_params,
            cost_estimate=cost,
        )(xp, w_blend)
    else:
        alpha_arr = jnp.asarray([alpha], dtype=jnp.float32)
        cost = pl.CostEstimate(
            flops=2 * Mp * K * N + 3 * K * N * grid_m,            # matmul + blend
            transcendentals=0,
            bytes_accessed=(Mp * K * grid_n + 2 * K * N * grid_m + Mp * N) * itemsize,
        )
        out = pl.pallas_call(
            _fused_kernel,
            out_shape=jax.ShapeDtypeStruct((Mp, N), out_dtype),
            grid=grid,
            in_specs=[
                pl.BlockSpec(memory_space=pltpu.SMEM),            # alpha scalar
                pl.BlockSpec((tm, tk), lambda i, j, k: (i, k)),   # x tile
                pl.BlockSpec((tk, tn), lambda i, j, k: (k, j)),   # W_orig tile
                pl.BlockSpec((tk, tn), lambda i, j, k: (k, j)),   # W_approx tile
            ],
            out_specs=pl.BlockSpec((tm, tn), lambda i, j, k: (i, j)),
            scratch_shapes=[pltpu.VMEM((tm, tn), jnp.float32)],
            compiler_params=compiler_params,
            cost_estimate=cost,
        )(alpha_arr, xp, w_orig, w_approx)

    return out[:M] if Mp != M else out


# ---------------------------------------------------------------------------
# Self-test
# ---------------------------------------------------------------------------

if __name__ == "__main__":
    key = jax.random.PRNGKey(0)
    k_x, k_w, k_a, k_x2, k_w2, k_a2 = jax.random.split(key, 6)

    ok = True

    # Case 1/2: f32 — default big tiles (fused, single step) and explicitly
    # small tiles (fused path with a multi-step K reduction / accumulator).
    M, K, N = 256, 512, 512            # tokens, in_features, out_features
    x = jax.random.normal(k_x, (M, K), dtype=jnp.float32)
    # torch `original.weight` would be (N, K); we keep its transpose (K, N).
    w_orig_t = jax.random.normal(k_w, (K, N), dtype=jnp.float32) * 0.05
    # `approximation` has shape (in_features, out_features) = (K, N).
    approximation = jax.random.normal(k_a, (K, N), dtype=jnp.float32) * 0.05

    for alpha, kw in ((0.0, {}), (0.3, dict(tm=128, tn=256, tk=128))):
        out = jax.block_until_ready(
            interpolator_forward(x, w_orig_t, approximation, alpha, **kw))
        ref = (1.0 - alpha) * (x @ w_orig_t) + alpha * (x @ approximation)
        if out.shape != (M, N) or not jnp.allclose(out, ref, atol=2e-3, rtol=2e-3):
            ok = False
            print(f"f32 alpha={alpha} tiles={kw}: "
                  f"max abs diff {jnp.max(jnp.abs(out - ref))}")

    # Case 3: bf16 operands, many M tiles -> pre-blend + plain matmul path.
    M2, K2, N2 = 640, 256, 384
    x2 = jax.random.normal(k_x2, (M2, K2), dtype=jnp.float32).astype(jnp.bfloat16)
    w2 = (jax.random.normal(k_w2, (K2, N2), dtype=jnp.float32) * 0.05).astype(jnp.bfloat16)
    a2 = (jax.random.normal(k_a2, (K2, N2), dtype=jnp.float32) * 0.05).astype(jnp.bfloat16)
    alpha = 0.25
    out2 = jax.block_until_ready(interpolator_forward(x2, w2, a2, alpha, tm=128))
    x2f, w2f, a2f = (v.astype(jnp.float32) for v in (x2, w2, a2))
    ref2 = (1.0 - alpha) * (x2f @ w2f) + alpha * (x2f @ a2f)
    err = jnp.max(jnp.abs(out2.astype(jnp.float32) - ref2))
    if out2.shape != (M2, N2) or err > 3e-2:
        ok = False
        print(f"bf16 pre-blend case: max abs diff {err}")

    assert ok
    print("KERNEL_OK")
</pallas_src>

<mosaic_0001>
module attributes {stable_mosaic.version = 11 : i64} {
  func.func @_fused_kernel(%arg0: i32, %arg1: i32, %arg2: i32, %arg3: memref<1xf32, #tpu.memory_space<smem>>, %arg4: memref<256x512xf32, #tpu.memory_space<vmem>>, %arg5: memref<512x256xf32, #tpu.memory_space<vmem>>, %arg6: memref<512x256xf32, #tpu.memory_space<vmem>>, %arg7: memref<256x256xf32, #tpu.memory_space<vmem>>, %arg8: memref<256x256xf32, #tpu.memory_space<vmem>>) attributes {dimension_semantics = [#tpu.dimension_semantics<parallel>, #tpu.dimension_semantics<parallel>, #tpu.dimension_semantics<arbitrary>], iteration_bounds = array<i64: 1, 2, 1>, scalar_prefetch = 0 : i64, scratch_operands = 1 : i64, tpu.core_type = #tpu.core_type<tc>, window_params = [{transform_indices = @transform_0, window_bounds = array<i64: 1>}, {transform_indices = @transform_1, window_bounds = array<i64: 256, 512>}, {transform_indices = @transform_2, window_bounds = array<i64: 512, 256>}, {transform_indices = @transform_3, window_bounds = array<i64: 512, 256>}, {transform_indices = @transform_4, window_bounds = array<i64: 256, 256>}]} {
    %c0_i32 = arith.constant 0 : i32
    %0 = arith.cmpi eq, %arg2, %c0_i32 : i32
    %1 = arith.extui %0 : i1 to i32
    %c0_i32_0 = arith.constant 0 : i32
    %2 = arith.cmpi ne, %1, %c0_i32_0 : i32
    scf.if %2 {
      %cst_14 = arith.constant 0.000000e+00 : f32
      %20 = vector.broadcast %cst_14 : f32 to vector<256x256xf32>
      %c0_15 = arith.constant 0 : index
      %c0_16 = arith.constant 0 : index
      %21 = vector.load %arg8[%c0_15, %c0_16] : memref<256x256xf32, #tpu.memory_space<vmem>>, vector<256x256xf32>
      tpu.vector_store %arg8[%c0_15, %c0_16], %20 {strides = array<i32>} : memref<256x256xf32, #tpu.memory_space<vmem>>, vector<256x256xf32>,
    } else {
    }
    %c0 = arith.constant 0 : index
    %3 = memref.load %arg3[%c0] : memref<1xf32, #tpu.memory_space<smem>>
    %cst = arith.constant 1.000000e+00 : f32
    %4 = arith.subf %cst, %3 : f32
    %c0_1 = arith.constant 0 : index
    %c0_2 = arith.constant 0 : index
    %5 = vector.load %arg5[%c0_1, %c0_2] : memref<512x256xf32, #tpu.memory_space<vmem>>, vector<512x256xf32>
    %6 = vector.broadcast %4 : f32 to vector<512x256xf32>
    %7 = arith.mulf %6, %5 : vector<512x256xf32>
    %c0_3 = arith.constant 0 : index
    %c0_4 = arith.constant 0 : index
    %8 = vector.load %arg6[%c0_3, %c0_4] : memref<512x256xf32, #tpu.memory_space<vmem>>, vector<512x256xf32>
    %9 = vector.broadcast %3 : f32 to vector<512x256xf32>
    %10 = arith.mulf %9, %8 : vector<512x256xf32>
    %11 = arith.addf %7, %10 : vector<512x256xf32>
    %c0_5 = arith.constant 0 : index
    %c0_6 = arith.constant 0 : index
    %12 = vector.load %arg8[%c0_5, %c0_6] : memref<256x256xf32, #tpu.memory_space<vmem>>, vector<256x256xf32>
    %c0_7 = arith.constant 0 : index
    %c0_8 = arith.constant 0 : index
    %13 = vector.load %arg4[%c0_7, %c0_8] : memref<256x512xf32, #tpu.memory_space<vmem>>, vector<256x512xf32>
    %cst_9 = arith.constant dense<0.000000e+00> : vector<256x256xf32>
    %14 = tpu.matmul %13, %11, %cst_9 {dimension_numbers = #tpu.dot_dimension_numbers<[1], [0], [0], [1], [0, 0, 1, 1], [], []>} : vector<256x512xf32>, vector<512x256xf32>, vector<256x256xf32> -> vector<256x256xf32>
    %15 = arith.addf %12, %14 : vector<256x256xf32>
    %c0_10 = arith.constant 0 : index
    %c0_11 = arith.constant 0 : index
    %16 = vector.load %arg8[%c0_10, %c0_11] : memref<256x256xf32, #tpu.memory_space<vmem>>, vector<256x256xf32>
    tpu.vector_store %arg8[%c0_10, %c0_11], %15 {strides = array<i32>} : memref<256x256xf32, #tpu.memory_space<vmem>>, vector<256x256xf32>,
    %c0_i32_12 = arith.constant 0 : i32
    %17 = arith.cmpi eq, %arg2, %c0_i32_12 : i32
    %18 = arith.extui %17 : i1 to i32
    %c0_i32_13 = arith.constant 0 : i32
    %19 = arith.cmpi ne, %18, %c0_i32_13 : i32
    scf.if %19 {
      %c0_14 = arith.constant 0 : index
      %c0_15 = arith.constant 0 : index
      %20 = vector.load %arg8[%c0_14, %c0_15] : memref<256x256xf32, #tpu.memory_space<vmem>>, vector<256x256xf32>
      %c0_16 = arith.constant 0 : index
      %c0_17 = arith.constant 0 : index
      %21 = vector.load %arg7[%c0_16, %c0_17] : memref<256x256xf32, #tpu.memory_space<vmem>>, vector<256x256xf32>
      tpu.vector_store %arg7[%c0_16, %c0_17], %20 {strides = array<i32>} : memref<256x256xf32, #tpu.memory_space<vmem>>, vector<256x256xf32>,
    } else {
    }
    return
  }
  func.func @transform_0(%arg0: i32, %arg1: i32, %arg2: i32) -> i32 {
    %c0_i32 = arith.constant 0 : i32
    %c0_i32_0 = arith.constant 0 : i32
    return %c0_i32 : i32
  }
  func.func @transform_1(%arg0: i32, %arg1: i32, %arg2: i32) -> (i32, i32) {
    %c0_i32 = arith.constant 0 : i32
    return %arg0, %arg2 : i32, i32
  }
  func.func @transform_2(%arg0: i32, %arg1: i32, %arg2: i32) -> (i32, i32) {
    %c0_i32 = arith.constant 0 : i32
    return %arg2, %arg1 : i32, i32
  }
  func.func @transform_3(%arg0: i32, %arg1: i32, %arg2: i32) -> (i32, i32) {
    %c0_i32 = arith.constant 0 : i32
    return %arg2, %arg1 : i32, i32
  }
  func.func @transform_4(%arg0: i32, %arg1: i32, %arg2: i32) -> (i32, i32) {
    %c0_i32 = arith.constant 0 : i32
    return %arg0, %arg1 : i32, i32
  }
}

</mosaic_0001>

<llo_original>
// kernel: tpu_custom_call.1
$region0: #{tpu_custom_call.1}
  #allocation0 [shape = 'u32[]', space=smem, size = 0x4, offset = 0x4, fixed_abs, tag = 'smem constant byte address 0x4 - core index']
  #allocation1 [shape = 'u32[144,128]{1,0:T(1,128)}', space=vmem, size = 0x12000, scoped, tag = 'internal scratch']
  #allocation2 [shape = 'f32[256,256]{1,0:T(8,128)}', space=vmem, size = 0x40000, scoped, tag = 'scratch operand']
  #allocation3 [shape = 'f32[1]{0:T(128)S(6)}', space=smem, size = 0x200, scoped, tag = 'scoped memory for tpu_custom_call.1']
  %s0 = inlined_call_operand.<no memory space> [shape: f32[1], index: 0, kind: input, shape index: {}]
  %s1 = inlined_call_operand.hbm [shape: f32[256,512], index: 1, kind: input, shape index: {}]
  %s2 = inlined_call_operand.hbm [shape: f32[512,512], index: 2, kind: input, shape index: {}]
  %s3 = inlined_call_operand.hbm [shape: f32[512,512], index: 3, kind: input, shape index: {}]
  %s4 = inlined_call_operand.hbm [shape: f32[256,512], index: 4, kind: output, shape index: {}]
  %s5 = sld [smem:[#allocation0]]
  $region69: #{tpu_custom_call.1} parent=0
    _
  %s7 = ssub.s32 1, %s5
  %s8 = scalar_select 0, %s7, %s5
  %9 = sst [smem:[#allocation3]] %s0
  $region1: #{tpu_custom_call.1} parent=0
    #allocation4 [shape = 'u8[524288]{0}', space=vmem, size = 0x80000, scoped, tag = 'input window, operand 1, single buffered']
    #allocation5 [shape = 's32[2]{0}', space=sflag, size = 0x8, scoped, tag = 'scoped memory for tpu_custom_call.1']
    #allocation6 [shape = 's32[2]{0}', space=sflag, size = 0x8, scoped, tag = 'scoped memory for tpu_custom_call.1']
    #allocation7 [shape = 'u8[1048576]{0}', space=vmem, size = 0x100000, scoped, tag = 'input window, operand 2']
    #allocation8 [shape = 's32[2]{0}', space=sflag, size = 0x8, scoped, tag = 'scoped memory for tpu_custom_call.1']
    #allocation9 [shape = 'u8[1048576]{0}', space=vmem, size = 0x100000, scoped, tag = 'input window, operand 3']
    #allocation10 [shape = 'u8[524288]{0}', space=vmem, size = 0x80000, scoped, tag = 'output window, operand 0']
    %10 = vsyncpa [#allocation5], 0
    %11 = vsyncpa [#allocation8], 0
    %s12 = scalar_lea.sflag [#allocation8], 1
    %13 = vsyncpa %s12, 0
    %14 = vsyncpa [#allocation6], 0
    %s15 = scalar_lea.sflag [#allocation6], 1
    %16 = vsyncpa %s15, 0
    loop: start=0, step=1, limit=4
    $region2: #{tpu_custom_call.1} parent=1 // loop_pre_header
      _
    $region3: #{tpu_custom_call.1} parent=1 // loop_header
      %s18 = sphi 0, %s22
      %p19 = scmp.ge.s32.totalorder %s18, 4
      %s25 = sphi 0, %s44
      %s26 = sphi 0, %s40
      %s27 = sphi 0, %s36
      %s28 = sphi 0, %s25
      %s29 = sphi 0, %s26
      %s30 = sphi 0, %s27
      %s31 = sphi 0, %s28
      %s32 = sphi 0, %s29
      %s33 = sphi 0, %s30
      %s45 = sphi 0, %s45
      %s47 = sphi 0, %s45
      %s48 = sphi 0, %s47
      %s62 = sphi 0, %s48
      %s70 = sphi 0, %s72
      %s73 = sphi 0, %s70
      %s74 = sphi 0, %s73
      %s90 = sphi 0, %s74
      %s98 = sphi 0, %s100
      %s101 = sphi 0, %s98
      %s102 = sphi 0, %s101
      %s118 = sphi 0, %s102
      %s126 = sphi 0, %s128
      %s129 = sphi 0, %s126
      %s130 = sphi 0, %s129
      %s146 = sphi 0, %s130
      %s154 = sphi 0, %s156
      %s157 = sphi 0, %s154
      %s158 = sphi 0, %s157
      %s174 = sphi 0, %s158
    $region4: #{tpu_custom_call.1} parent=1 // loop_header_branch
      %21 = sbr.rel (%p19) target = $region8
    $region5: #{tpu_custom_call.1} parent=1 // loop_body
      %s23 = ssub.s32 %s18, 1
      %s24 = ssub.s32 %s18, 2
      %s34 = sadd.s32 1, %s27
      %p35 = scmp.ge.s32.totalorder %s34, 1
      %s36 = scalar_select %p35, 0, %s34
      %s37 = sadd.s32 1, %s26
      %s38 = scalar_select %p35, %s37, %s26
      %p39 = scmp.ge.s32.totalorder %s38, 2
      %s40 = scalar_select %p39, 0, %s38
      %s41 = sadd.s32 1, %s25
      %s42 = scalar_select %p39, %s41, %s25
      %p43 = scmp.ge.s32.totalorder %s42, 1
      %s44 = scalar_select %p43, 0, %s42
      %s46 = sadd.s32 %s45, 1
      %p49 = scmp.eq.s32.totalorder %s18, 1
      %p50 = scmp.ne.s32.totalorder %s45, %s47
      %p51 = scmp.eq.s32.totalorder %s18, 0
      %p52 = por %p50, %p51
      %p53 = scmp.ne.s32.totalorder %s45, %s47
      %p54 = scmp.eq.s32.totalorder %s23, 1
      %p55 = por %p53, %p54
      %p56 = scmp.ne.s32.totalorder %s47, %s48
      %p57 = scmp.eq.s32.totalorder %s23, 0
      %p58 = por %p56, %p57
      %p59 = scmp.ne.s32.totalorder %s47, %s48
      %p60 = scmp.eq.s32.totalorder %s24, 1
      %p61 = por %p59, %p60
      %p63 = scmp.ne.s32.totalorder %s48, %s62
      %p64 = scmp.eq.s32.totalorder %s24, 0
      %p65 = por %p63, %p64
      %s66 = ssub.s32 %s25, %s44
      %s67 = ssub.s32 %s27, %s36
      %s68 = sor.u32 %s66, %s67
      %p69 = scmp.eq.s32.totalorder %s68, 0
      %s71 = sadd.s32 %s70, 1
      %s72 = scalar_select %p69, %s70, %s71
      %p75 = pneg %p69
      %p76 = scmp.eq.s32.totalorder %s18, 1
      %p77 = por %p75, %p76
      %p78 = scmp.ne.s32.totalorder %s70, %s73
      %p79 = scmp.eq.s32.totalorder %s18, 0
      %p80 = por %p78, %p79
      %p81 = scmp.ne.s32.totalorder %s70, %s73
      %p82 = scmp.eq.s32.totalorder %s23, 1
      %p83 = por %p81, %p82
      %p84 = scmp.ne.s32.totalorder %s73, %s74
      %p85 = scmp.eq.s32.totalorder %s23, 0
      %p86 = por %p84, %p85
      %p87 = scmp.ne.s32.totalorder %s73, %s74
      %p88 = scmp.eq.s32.totalorder %s24, 1
      %p89 = por %p87, %p88
      %p91 = scmp.ne.s32.totalorder %s74, %s90
      %p92 = scmp.eq.s32.totalorder %s24, 0
      %p93 = por %p91, %p92
      %s94 = ssub.s32 %s27, %s36
      %s95 = ssub.s32 %s26, %s40
      %s96 = sor.u32 %s94, %s95
      %p97 = scmp.eq.s32.totalorder %s96, 0
      %s99 = sadd.s32 %s98, 1
      %s100 = scalar_select %p97, %s98, %s99
      %p103 = pneg %p97
      %p104 = scmp.eq.s32.totalorder %s18, 1
      %p105 = por %p103, %p104
      %p106 = scmp.ne.s32.totalorder %s98, %s101
      %p107 = scmp.eq.s32.totalorder %s18, 0
      %p108 = por %p106, %p107
      %p109 = scmp.ne.s32.totalorder %s98, %s101
      %p110 = scmp.eq.s32.totalorder %s23, 1
      %p111 = por %p109, %p110
      %p112 = scmp.ne.s32.totalorder %s101, %s102
      %p113 = scmp.eq.s32.totalorder %s23, 0
      %p114 = por %p112, %p113
      %p115 = scmp.ne.s32.totalorder %s101, %s102
      %p116 = scmp.eq.s32.totalorder %s24, 1
      %p117 = por %p115, %p116
      %p119 = scmp.ne.s32.totalorder %s102, %s118
      %p120 = scmp.eq.s32.totalorder %s24, 0
      %p121 = por %p119, %p120
      %s122 = ssub.s32 %s27, %s36
      %s123 = ssub.s32 %s26, %s40
      %s124 = sor.u32 %s122, %s123
      %p125 = scmp.eq.s32.totalorder %s124, 0
      %s127 = sadd.s32 %s126, 1
      %s128 = scalar_select %p125, %s126, %s127
      %p131 = pneg %p125
      %p132 = scmp.eq.s32.totalorder %s18, 1
      %p133 = por %p131, %p132
      %p134 = scmp.ne.s32.totalorder %s126, %s129
      %p135 = scmp.eq.s32.totalorder %s18, 0
      %p136 = por %p134, %p135
      %p137 = scmp.ne.s32.totalorder %s126, %s129
      %p138 = scmp.eq.s32.totalorder %s23, 1
      %p139 = por %p137, %p138
      %p140 = scmp.ne.s32.totalorder %s129, %s130
      %p141 = scmp.eq.s32.totalorder %s23, 0
      %p142 = por %p140, %p141
      %p143 = scmp.ne.s32.totalorder %s129, %s130
      %p144 = scmp.eq.s32.totalorder %s24, 1
      %p145 = por %p143, %p144
      %p147 = scmp.ne.s32.totalorder %s130, %s146
      %p148 = scmp.eq.s32.totalorder %s24, 0
      %p149 = por %p147, %p148
      %s150 = ssub.s32 %s25, %s44
      %s151 = ssub.s32 %s26, %s40
      %s152 = sor.u32 %s150, %s151
      %p153 = scmp.eq.s32.totalorder %s152, 0
      %s155 = sadd.s32 %s154, 1
      %s156 = scalar_select %p153, %s154, %s155
      %p159 = pneg %p153
      %p160 = scmp.eq.s32.totalorder %s18, 1
      %p161 = por %p159, %p160
      %p162 = scmp.ne.s32.totalorder %s154, %s157
      %p163 = scmp.eq.s32.totalorder %s18, 0
      %p164 = por %p162, %p163
      %p165 = scmp.ne.s32.totalorder %s154, %s157
      %p166 = scmp.eq.s32.totalorder %s23, 1
      %p167 = por %p165, %p166
      %p168 = scmp.ne.s32.totalorder %s157, %s158
      %p169 = scmp.eq.s32.totalorder %s23, 0
      %p170 = por %p168, %p169
      %p171 = scmp.ne.s32.totalorder %s157, %s158
      %p172 = scmp.eq.s32.totalorder %s24, 1
      %p173 = por %p171, %p172
      %p175 = scmp.ne.s32.totalorder %s158, %s174
      %p176 = scmp.eq.s32.totalorder %s24, 0
      %p177 = por %p175, %p176
      %p178 = scmp.le.s32.totalorder 1, %s18
      %p179 = scmp.lt.s32.totalorder %s18, 3
      %p180 = pnand %p178, %p179
      %p181 = pneg %p180
      // Predicated region
      $region9: #{tpu_custom_call.1} parent=5 // pred_check
        _
      $region10: #{tpu_custom_call.1} parent=5 // pred_check_branch
        %183 = sbr.rel (%p180) target = $region12
      $region11: #{tpu_custom_call.1} parent=5 // pred_region
        %s184 = ssub.s32 %s18, 1
        // Predicated region
        $region13: #{tpu_custom_call.1} parent=11 // pred_check
          %p185 = pneg %p58
        $region14: #{tpu_custom_call.1} parent=11 // pred_check_branch
          %187 = sbr.rel (%p185) target = $region16
        $region15: #{tpu_custom_call.1} parent=11 // pred_region
          _
        $region16: #{tpu_custom_call.1} parent=11 // pred_fallthru
          _
        // Predicated region
        $region17: #{tpu_custom_call.1} parent=11 // pred_check
          %p188 = pneg %p86
        $region18: #{tpu_custom_call.1} parent=11 // pred_check_branch
          %190 = sbr.rel (%p188) target = $region20
        $region19: #{tpu_custom_call.1} parent=11 // pred_region
          %s191 = smul.u32 32, %s28
          %s192 = smul.u32 4, %s30
          %s194 = ssub.s32 16384, 16384
          %195 = vsyncadd [#allocation5], %s194
          %s196 = smul.addr %s191, 4
          %s197 = sadd.s32 %s192, %s196
          %s198 = smul.addr %s197, 128
          %s199 = scalar_lea.hbm %s1, %s198
          %s200 = sshll.u32 [#allocation4], 4
          %s201 = int_to_ptr.vmem [resolvable:$true] %s200
          %206 = dma.hbm_to_vmem [thread:$0]  %s199, 16384, %s201, [#allocation5], 512, 512, 32
        $region20: #{tpu_custom_call.1} parent=11 // pred_fallthru
          _
      $region12: #{tpu_custom_call.1} parent=5 // pred_fallthru
        _
      %p207 = scmp.lt.s32.totalorder %s18, 2
      // Predicated region
      $region21: #{tpu_custom_call.1} parent=5 // pred_check
        %p208 = pneg %p207
      $region22: #{tpu_custom_call.1} parent=5 // pred_check_branch
        %210 = sbr.rel (%p208) target = $region24
      $region23: #{tpu_custom_call.1} parent=5 // pred_region
        // Predicated region
        $region25: #{tpu_custom_call.1} parent=23 // pred_check
          %p211 = pneg %p108
        $region26: #{tpu_custom_call.1} parent=23 // pred_check_branch
          %213 = sbr.rel (%p211) target = $region28
        $region27: #{tpu_custom_call.1} parent=23 // pred_region
          %s214 = sand.u32 %s18, 1
          %s215 = scalar_lea.sflag [#allocation8], %s214
          %s216 = sand.u32 %s98, 1
          %s217 = smul.addr %s216, 1024
          %s218 = scalar_lea.vmem [#allocation7], %s217
          %s219 = smul.u32 64, %s27
          %s220 = smul.u32 2, %s26
          %s222 = ssub.s32 16384, 16384
          %223 = vsyncadd %s215, %s222
          %s224 = smul.addr %s219, 4
          %s225 = sadd.s32 %s220, %s224
          %s226 = smul.addr %s225, 128
          %s227 = scalar_lea.hbm %s2, %s226
          %s228 = sshll.u32 %s218, 4
          %s229 = int_to_ptr.vmem [resolvable:$true] %s228
          %234 = dma.hbm_to_vmem [thread:$0]  %s227, 16384, %s229, %s215, 512, 256, 16
        $region28: #{tpu_custom_call.1} parent=23 // pred_fallthru
          _
        // Predicated region
        $region29: #{tpu_custom_call.1} parent=23 // pred_check
          %p235 = pneg %p136
        $region30: #{tpu_custom_call.1} parent=23 // pred_check_branch
          %237 = sbr.rel (%p235) target = $region32
        $region31: #{tpu_custom_call.1} parent=23 // pred_region
          %s238 = sand.u32 %s18, 1
          %s239 = scalar_lea.sflag [#allocation8], %s238
          %s240 = sand.u32 %s126, 1
          %s241 = smul.addr %s240, 1024
          %s242 = scalar_lea.vmem [#allocation9], %s241
          %s243 = smul.u32 64, %s27
          %s244 = smul.u32 2, %s26
          %s246 = ssub.s32 16384, 16384
          %247 = vsyncadd %s239, %s246
          %s248 = smul.addr %s243, 4
          %s249 = sadd.s32 %s244, %s248
          %s250 = smul.addr %s249, 128
          %s251 = scalar_lea.hbm %s3, %s250
          %s252 = sshll.u32 %s242, 4
          %s253 = int_to_ptr.vmem [resolvable:$true] %s252
          %258 = dma.hbm_to_vmem [thread:$0]  %s251, 16384, %s253, %s239, 512, 256, 16
        $region32: #{tpu_custom_call.1} parent=23 // pred_fallthru
          _
      $region24: #{tpu_custom_call.1} parent=5 // pred_fallthru
        _
      %p259 = scmp.le.s32.totalorder 1, %s18
      %p260 = scmp.lt.s32.totalorder %s18, 3
      %p261 = pnand %p259, %p260
      %p262 = pneg %p261
      // Predicated region
      $region33: #{tpu_custom_call.1} parent=5 // pred_check
        _
      $region34: #{tpu_custom_call.1} parent=5 // pred_check_branch
        %264 = sbr.rel (%p261) target = $region36
      $region35: #{tpu_custom_call.1} parent=5 // pred_region
        %s265 = ssub.s32 %s18, 1
        // Predicated region
        $region37: #{tpu_custom_call.1} parent=35 // pred_check
          %p266 = pneg %p86
        $region38: #{tpu_custom_call.1} parent=35 // pred_check_branch
          %268 = sbr.rel (%p266) target = $region40
        $region39: #{tpu_custom_call.1} parent=35 // pred_region
          %269 = dma.done [#allocation5], 16384
        $region40: #{tpu_custom_call.1} parent=35 // pred_fallthru
          _
        %s270 = sand.u32 %s23, 1
        %s271 = scalar_lea.sflag [#allocation8], %s270
        %s272 = sand.u32 %s101, 1
        %s273 = smul.addr %s272, 1024
        %s274 = scalar_lea.vmem [#allocation7], %s273
        // Predicated region
        $region41: #{tpu_custom_call.1} parent=35 // pred_check
          %p275 = pneg %p114
        $region42: #{tpu_custom_call.1} parent=35 // pred_check_branch
          %277 = sbr.rel (%p275) target = $region44
        $region43: #{tpu_custom_call.1} parent=35 // pred_region
          %278 = dma.done %s271, 16384
        $region44: #{tpu_custom_call.1} parent=35 // pred_fallthru
          _
        %s279 = sand.u32 %s23, 1
        %s280 = scalar_lea.sflag [#allocation8], %s279
        %s281 = sand.u32 %s129, 1
        %s282 = smul.addr %s281, 1024
        %s283 = scalar_lea.vmem [#allocation9], %s282
        // Predicated region
        $region45: #{tpu_custom_call.1} parent=35 // pred_check
          %p284 = pneg %p142
        $region46: #{tpu_custom_call.1} parent=35 // pred_check_branch
          %286 = sbr.rel (%p284) target = $region48
        $region47: #{tpu_custom_call.1} parent=35 // pred_region
          %287 = dma.done %s280, 16384
        $region48: #{tpu_custom_call.1} parent=35 // pred_fallthru
          _
        %p288 = pneg %p58
        %p289 = pneg %p55
        %p290 = pneg %p86
        %p291 = pneg %p83
        %s292 = sand.u32 %s23, 1
        %s293 = scalar_lea.sflag [#allocation8], %s292
        %s294 = sand.u32 %s101, 1
        %s295 = smul.addr %s294, 1024
        %s296 = scalar_lea.vmem [#allocation7], %s295
        %p297 = pneg %p114
        %p298 = pneg %p111
        %s299 = sand.u32 %s23, 1
        %s300 = scalar_lea.sflag [#allocation8], %s299
        %s301 = sand.u32 %s129, 1
        %s302 = smul.addr %s301, 1024
        %s303 = scalar_lea.vmem [#allocation9], %s302
        %p304 = pneg %p142
        %p305 = pneg %p139
        %p306 = pneg %p170
        %p307 = pneg %p167
        %s308 = sand.u32 %s157, 1
        %s309 = scalar_lea.sflag [#allocation6], %s308
        %s310 = sand.u32 %s157, 1
        %s311 = smul.addr %s310, 512
        %s312 = scalar_lea.vmem [#allocation10], %s311
        %s313 = smul.u32 32, %s28
        %s314 = smul.u32 4, %s30
        %s315 = smul.u32 64, %s30
        %s316 = smul.u32 2, %s29
        %s317 = smul.u32 64, %s30
        %s318 = smul.u32 2, %s29
        %s319 = smul.u32 32, %s28
        %s320 = smul.u32 2, %s29
        %p321 = scmp.eq.s32.totalorder %s30, 0
        // Predicated region
        $region49: #{tpu_custom_call.1} parent=35 // pred_check
          %p322 = pneg %p321
        $region50: #{tpu_custom_call.1} parent=35 // pred_check_branch
          %324 = sbr.rel (%p322) target = $region52
        $region51: #{tpu_custom_call.1} parent=35 // pred_region
          %325 = vst [vmem:[#allocation2] sm:$0xff] 0.0
          %326 = vst [vmem:[#allocation2 + $0x8] sm:$0xff] 0.0
          %327 = vst [vmem:[#allocation2 + $0x10] sm:$0xff] 0.0
          %328 = vst [vmem:[#allocation2 + $0x18] sm:$0xff] 0.0
          %329 = vst [vmem:[#allocation2 + $0x20] sm:$0xff] 0.0
          %330 = vst [vmem:[#allocation2 + $0x28] sm:$0xff] 0.0
          %331 = vst [vmem:[#allocation2 + $0x30] sm:$0xff] 0.0
          %332 = vst [vmem:[#allocation2 + $0x38] sm:$0xff] 0.0
          %333 = vst [vmem:[#allocation2 + $0x40] sm:$0xff] 0.0
          %334 = vst [vmem:[#allocation2 + $0x48] sm:$0xff] 0.0
          %335 = vst [vmem:[#allocation2 + $0x50] sm:$0xff] 0.0
          %336 = vst [vmem:[#allocation2 + $0x58] sm:$0xff] 0.0
          %337 = vst [vmem:[#allocation2 + $0x60] sm:$0xff] 0.0
          %338 = vst [vmem:[#allocation2 + $0x68] sm:$0xff] 0.0
          %339 = vst [vmem:[#allocation2 + $0x70] sm:$0xff] 0.0
          %340 = vst [vmem:[#allocation2 + $0x78] sm:$0xff] 0.0
          %341 = vst [vmem:[#allocation2 + $0x80] sm:$0xff] 0.0
          %342 = vst [vmem:[#allocation2 + $0x88] sm:$0xff] 0.0
          %343 = vst [vmem:[#allocation2 + $0x90] sm:$0xff] 0.0
          %344 = vst [vmem:[#allocation2 + $0x98] sm:$0xff] 0.0
          %345 = vst [vmem:[#allocation2 + $0xa0] sm:$0xff] 0.0
          %346 = vst [vmem:[#allocation2 + $0xa8] sm:$0xff] 0.0
          %347 = vst [vmem:[#allocation2 + $0xb0] sm:$0xff] 0.0
          %348 = vst [vmem:[#allocation2 + $0xb8] sm:$0xff] 0.0
          %349 = vst [vmem:[#allocation2 + $0xc0] sm:$0xff] 0.0
          %350 = vst [vmem:[#allocation2 + $0xc8] sm:$0xff] 0.0
          %351 = vst [vmem:[#allocation2 + $0xd0] sm:$0xff] 0.0
          %352 = vst [vmem:[#allocation2 + $0xd8] sm:$0xff] 0.0
          %353 = vst [vmem:[#allocation2 + $0xe0] sm:$0xff] 0.0
          %354 = vst [vmem:[#allocation2 + $0xe8] sm:$0xff] 0.0
          %355 = vst [vmem:[#allocation2 + $0xf0] sm:$0xff] 0.0
          %356 = vst [vmem:[#allocation2 + $0xf8] sm:$0xff] 0.0
          %357 = vst [vmem:[#allocation2 + $0x100] sm:$0xff] 0.0
          %358 = vst [vmem:[#allocation2 + $0x108] sm:$0xff] 0.0
          %359 = vst [vmem:[#allocation2 + $0x110] sm:$0xff] 0.0
          %360 = vst [vmem:[#allocation2 + $0x118] sm:$0xff] 0.0
          %361 = vst [vmem:[#allocation2 + $0x120] sm:$0xff] 0.0
          %362 = vst [vmem:[#allocation2 + $0x128] sm:$0xff] 0.0
          %363 = vst [vmem:[#allocation2 + $0x130] sm:$0xff] 0.0
          %364 = vst [vmem:[#allocation2 + $0x138] sm:$0xff] 0.0
          %365 = vst [vmem:[#allocation2 + $0x140] sm:$0xff] 0.0
          %366 = vst [vmem:[#allocation2 + $0x148] sm:$0xff] 0.0
          %367 = vst [vmem:[#allocation2 + $0x150] sm:$0xff] 0.0
          %368 = vst [vmem:[#allocation2 + $0x158] sm:$0xff] 0.0
          %369 = vst [vmem:[#allocation2 + $0x160] sm:$0xff] 0.0
          %370 = vst [vmem:[#allocation2 + $0x168] sm:$0xff] 0.0
          %371 = vst [vmem:[#allocation2 + $0x170] sm:$0xff] 0.0
          %372 = vst [vmem:[#allocation2 + $0x178] sm:$0xff] 0.0
          %373 = vst [vmem:[#allocation2 + $0x180] sm:$0xff] 0.0
          %374 = vst [vmem:[#allocation2 + $0x188] sm:$0xff] 0.0
          %375 = vst [vmem:[#allocation2 + $0x190] sm:$0xff] 0.0
          %376 = vst [vmem:[#allocation2 + $0x198] sm:$0xff] 0.0
          %377 = vst [vmem:[#allocation2 + $0x1a0] sm:$0xff] 0.0
          %378 = vst [vmem:[#allocation2 + $0x1a8] sm:$0xff] 0.0
          %379 = vst [vmem:[#allocation2 + $0x1b0] sm:$0xff] 0.0
          %380 = vst [vmem:[#allocation2 + $0x1b8] sm:$0xff] 0.0
          %381 = vst [vmem:[#allocation2 + $0x1c0] sm:$0xff] 0.0
          %382 = vst [vmem:[#allocation2 + $0x1c8] sm:$0xff] 0.0
          %383 = vst [vmem:[#allocation2 + $0x1d0] sm:$0xff] 0.0
          %384 = vst [vmem:[#allocation2 + $0x1d8] sm:$0xff] 0.0
          %385 = vst [vmem:[#allocation2 + $0x1e0] sm:$0xff] 0.0
          %386 = vst [vmem:[#allocation2 + $0x1e8] sm:$0xff] 0.0
          %387 = vst [vmem:[#allocation2 + $0x1f0] sm:$0xff] 0.0
          %388 = vst [vmem:[#allocation2 + $0x1f8] sm:$0xff] 0.0
        $region52: #{tpu_custom_call.1} parent=35 // pred_fallthru
          _
        %s389 = sld [smem:[#allocation3]]
        %s390 = ssub.f32 1.0, %s389
        %v391 = vld [vmem:[%s274] sm:$0xff]
        %v392 = vld [vmem:[%s274 + $0x8] sm:$0xff]
        %v393 = vld [vmem:[%s274 + $0x10] sm:$0xff]
        %v394 = vld [vmem:[%s274 + $0x18] sm:$0xff]
        %v395 = vld [vmem:[%s274 + $0x20] sm:$0xff]
        %v396 = vld [vmem:[%s274 + $0x28] sm:$0xff]
        %v397 = vld [vmem:[%s274 + $0x30] sm:$0xff]
        %v398 = vld [vmem:[%s274 + $0x38] sm:$0xff]
        %v399 = vld [vmem:[%s274 + $0x40] sm:$0xff]
        %v400 = vld [vmem:[%s274 + $0x48] sm:$0xff]
        %v401 = vld [vmem:[%s274 + $0x50] sm:$0xff]
        %v402 = vld [vmem:[%s274 + $0x58] sm:$0xff]
        %v403 = vld [vmem:[%s274 + $0x60] sm:$0xff]
        %v404 = vld [vmem:[%s274 + $0x68] sm:$0xff]
        %v405 = vld [vmem:[%s274 + $0x70] sm:$0xff]
        %v406 = vld [vmem:[%s274 + $0x78] sm:$0xff]
        %v407 = vld [vmem:[%s274 + $0x80] sm:$0xff]
        %v408 = vld [vmem:[%s274 + $0x88] sm:$0xff]
        %v409 = vld [vmem:[%s274 + $0x90] sm:$0xff]
        %v410 = vld [vmem:[%s274 + $0x98] sm:$0xff]
        %v411 = vld [vmem:[%s274 + $0xa0] sm:$0xff]
        %v412 = vld [vmem:[%s274 + $0xa8] sm:$0xff]
        %v413 = vld [vmem:[%s274 + $0xb0] sm:$0xff]
        %v414 = vld [vmem:[%s274 + $0xb8] sm:$0xff]
        %v415 = vld [vmem:[%s274 + $0xc0] sm:$0xff]
        %v416 = vld [vmem:[%s274 + $0xc8] sm:$0xff]
        %v417 = vld [vmem:[%s274 + $0xd0] sm:$0xff]
        %v418 = vld [vmem:[%s274 + $0xd8] sm:$0xff]
        %v419 = vld [vmem:[%s274 + $0xe0] sm:$0xff]
        %v420 = vld [vmem:[%s274 + $0xe8] sm:$0xff]
        %v421 = vld [vmem:[%s274 + $0xf0] sm:$0xff]
        %v422 = vld [vmem:[%s274 + $0xf8] sm:$0xff]
        %v423 = vld [vmem:[%s274 + $0x100] sm:$0xff]
        %v424 = vld [vmem:[%s274 + $0x108] sm:$0xff]
        %v425 = vld [vmem:[%s274 + $0x110] sm:$0xff]
        %v426 = vld [vmem:[%s274 + $0x118] sm:$0xff]
        %v427 = vld [vmem:[%s274 + $0x120] sm:$0xff]
        %v428 = vld [vmem:[%s274 + $0x128] sm:$0xff]
        %v429 = vld [vmem:[%s274 + $0x130] sm:$0xff]
        %v430 = vld [vmem:[%s274 + $0x138] sm:$0xff]
        %v431 = vld [vmem:[%s274 + $0x140] sm:$0xff]
        %v432 = vld [vmem:[%s274 + $0x148] sm:$0xff]
        %v433 = vld [vmem:[%s274 + $0x150] sm:$0xff]
        %v434 = vld [vmem:[%s274 + $0x158] sm:$0xff]
        %v435 = vld [vmem:[%s274 + $0x160] sm:$0xff]
        %v436 = vld [vmem:[%s274 + $0x168] sm:$0xff]
        %v437 = vld [vmem:[%s274 + $0x170] sm:$0xff]
        %v438 = vld [vmem:[%s274 + $0x178] sm:$0xff]
        %v439 = vld [vmem:[%s274 + $0x180] sm:$0xff]
        %v440 = vld [vmem:[%s274 + $0x188] sm:$0xff]
        %v441 = vld [vmem:[%s274 + $0x190] sm:$0xff]
        %v442 = vld [vmem:[%s274 + $0x198] sm:$0xff]
        %v443 = vld [vmem:[%s274 + $0x1a0] sm:$0xff]
        %v444 = vld [vmem:[%s274 + $0x1a8] sm:$0xff]
        %v445 = vld [vmem:[%s274 + $0x1b0] sm:$0xff]
        %v446 = vld [vmem:[%s274 + $0x1b8] sm:$0xff]
        %v447 = vld [vmem:[%s274 + $0x1c0] sm:$0xff]
        %v448 = vld [vmem:[%s274 + $0x1c8] sm:$0xff]
        %v449 = vld [vmem:[%s274 + $0x1d0] sm:$0xff]
        %v450 = vld [vmem:[%s274 + $0x1d8] sm:$0xff]
        %v451 = vld [vmem:[%s274 + $0x1e0] sm:$0xff]
        %v452 = vld [vmem:[%s274 + $0x1e8] sm:$0xff]
        %v453 = vld [vmem:[%s274 + $0x1f0] sm:$0xff]
        %v454 = vld [vmem:[%s274 + $0x1f8] sm:$0xff]
        %v455 = vld [vmem:[%s274 + $0x200] sm:$0xff]
        %v456 = vld [vmem:[%s274 + $0x208] sm:$0xff]
        %v457 = vld [vmem:[%s274 + $0x210] sm:$0xff]
        %v458 = vld [vmem:[%s274 + $0x218] sm:$0xff]
        %v459 = vld [vmem:[%s274 + $0x220] sm:$0xff]
        %v460 = vld [vmem:[%s274 + $0x228] sm:$0xff]
        %v461 = vld [vmem:[%s274 + $0x230] sm:$0xff]
        %v462 = vld [vmem:[%s274 + $0x238] sm:$0xff]
        %v463 = vld [vmem:[%s274 + $0x240] sm:$0xff]
        %v464 = vld [vmem:[%s274 + $0x248] sm:$0xff]
        %v465 = vld [vmem:[%s274 + $0x250] sm:$0xff]
        %v466 = vld [vmem:[%s274 + $0x258] sm:$0xff]
        %v467 = vld [vmem:[%s274 + $0x260] sm:$0xff]
        %v468 = vld [vmem:[%s274 + $0x268] sm:$0xff]
        %v469 = vld [vmem:[%s274 + $0x270] sm:$0xff]
        %v470 = vld [vmem:[%s274 + $0x278] sm:$0xff]
        %v471 = vld [vmem:[%s274 + $0x280] sm:$0xff]
        %v472 = vld [vmem:[%s274 + $0x288] sm:$0xff]
        %v473 = vld [vmem:[%s274 + $0x290] sm:$0xff]
        %v474 = vld [vmem:[%s274 + $0x298] sm:$0xff]
        %v475 = vld [vmem:[%s274 + $0x2a0] sm:$0xff]
        %v476 = vld [vmem:[%s274 + $0x2a8] sm:$0xff]
        %v477 = vld [vmem:[%s274 + $0x2b0] sm:$0xff]
        %v478 = vld [vmem:[%s274 + $0x2b8] sm:$0xff]
        %v479 = vld [vmem:[%s274 + $0x2c0] sm:$0xff]
        %v480 = vld [vmem:[%s274 + $0x2c8] sm:$0xff]
        %v481 = vld [vmem:[%s274 + $0x2d0] sm:$0xff]
        %v482 = vld [vmem:[%s274 + $0x2d8] sm:$0xff]
        %v483 = vld [vmem:[%s274 + $0x2e0] sm:$0xff]
        %v484 = vld [vmem:[%s274 + $0x2e8] sm:$0xff]
        %v485 = vld [vmem:[%s274 + $0x2f0] sm:$0xff]
        %v486 = vld [vmem:[%s274 + $0x2f8] sm:$0xff]
        %v487 = vld [vmem:[%s274 + $0x300] sm:$0xff]
        %v488 = vld [vmem:[%s274 + $0x308] sm:$0xff]
        %v489 = vld [vmem:[%s274 + $0x310] sm:$0xff]
        %v490 = vld [vmem:[%s274 + $0x318] sm:$0xff]
        %v491 = vld [vmem:[%s274 + $0x320] sm:$0xff]
        %v492 = vld [vmem:[%s274 + $0x328] sm:$0xff]
        %v493 = vld [vmem:[%s274 + $0x330] sm:$0xff]
        %v494 = vld [vmem:[%s274 + $0x338] sm:$0xff]
        %v495 = vld [vmem:[%s274 + $0x340] sm:$0xff]
        %v496 = vld [vmem:[%s274 + $0x348] sm:$0xff]
        %v497 = vld [vmem:[%s274 + $0x350] sm:$0xff]
        %v498 = vld [vmem:[%s274 + $0x358] sm:$0xff]
        %v499 = vld [vmem:[%s274 + $0x360] sm:$0xff]
        %v500 = vld [vmem:[%s274 + $0x368] sm:$0xff]
        %v501 = vld [vmem:[%s274 + $0x370] sm:$0xff]
        %v502 = vld [vmem:[%s274 + $0x378] sm:$0xff]
        %v503 = vld [vmem:[%s274 + $0x380] sm:$0xff]
        %v504 = vld [vmem:[%s274 + $0x388] sm:$0xff]
        %v505 = vld [vmem:[%s274 + $0x390] sm:$0xff]
        %v506 = vld [vmem:[%s274 + $0x398] sm:$0xff]
        %v507 = vld [vmem:[%s274 + $0x3a0] sm:$0xff]
        %v508 = vld [vmem:[%s274 + $0x3a8] sm:$0xff]
        %v509 = vld [vmem:[%s274 + $0x3b0] sm:$0xff]
        %v510 = vld [vmem:[%s274 + $0x3b8] sm:$0xff]
        %v511 = vld [vmem:[%s274 + $0x3c0] sm:$0xff]
        %v512 = vld [vmem:[%s274 + $0x3c8] sm:$0xff]
        %v513 = vld [vmem:[%s274 + $0x3d0] sm:$0xff]
        %v514 = vld [vmem:[%s274 + $0x3d8] sm:$0xff]
        %v515 = vld [vmem:[%s274 + $0x3e0] sm:$0xff]
        %v516 = vld [vmem:[%s274 + $0x3e8] sm:$0xff]
        %v517 = vld [vmem:[%s274 + $0x3f0] sm:$0xff]
        %v518 = vld [vmem:[%s274 + $0x3f8] sm:$0xff]
        %v519 = vstv %s390
        %v520 = vmul.f32 %v519, %v391
        %v521 = vmul.f32 %v519, %v392
        %v522 = vmul.f32 %v519, %v393
        %v523 = vmul.f32 %v519, %v394
        %v524 = vmul.f32 %v519, %v395
        %v525 = vmul.f32 %v519, %v396
        %v526 = vmul.f32 %v519, %v397
        %v527 = vmul.f32 %v519, %v398
        %v528 = vmul.f32 %v519, %v399
        %v529 = vmul.f32 %v519, %v400
        %v530 = vmul.f32 %v519, %v401
        %v531 = vmul.f32 %v519, %v402
        %v532 = vmul.f32 %v519, %v403
        %v533 = vmul.f32 %v519, %v404
        %v534 = vmul.f32 %v519, %v405
        %v535 = vmul.f32 %v519, %v406
        %v536 = vmul.f32 %v519, %v407
        %v537 = vmul.f32 %v519, %v408
        %v538 = vmul.f32 %v519, %v409
        %v539 = vmul.f32 %v519, %v410
        %v540 = vmul.f32 %v519, %v411
        %v541 = vmul.f32 %v519, %v412
        %v542 = vmul.f32 %v519, %v413
        %v543 = vmul.f32 %v519, %v414
        %v544 = vmul.f32 %v519, %v415
        %v545 = vmul.f32 %v519, %v416
        %v546 = vmul.f32 %v519, %v417
        %v547 = vmul.f32 %v519, %v418
        %v548 = vmul.f32 %v519, %v419
        %v549 = vmul.f32 %v519, %v420
        %v550 = vmul.f32 %v519, %v421
        %v551 = vmul.f32 %v519, %v422
        %v552 = vmul.f32 %v519, %v423
        %v553 = vmul.f32 %v519, %v424
        %v554 = vmul.f32 %v519, %v425
        %v555 = vmul.f32 %v519, %v426
        %v556 = vmul.f32 %v519, %v427
        %v557 = vmul.f32 %v519, %v428
        %v558 = vmul.f32 %v519, %v429
        %v559 = vmul.f32 %v519, %v430
        %v560 = vmul.f32 %v519, %v431
        %v561 = vmul.f32 %v519, %v432
        %v562 = vmul.f32 %v519, %v433
        %v563 = vmul.f32 %v519, %v434
        %v564 = vmul.f32 %v519, %v435
        %v565 = vmul.f32 %v519, %v436
        %v566 = vmul.f32 %v519, %v437
        %v567 = vmul.f32 %v519, %v438
        %v568 = vmul.f32 %v519, %v439
        %v569 = vmul.f32 %v519, %v440
        %v570 = vmul.f32 %v519, %v441
        %v571 = vmul.f32 %v519, %v442
        %v572 = vmul.f32 %v519, %v443
        %v573 = vmul.f32 %v519, %v444
        %v574 = vmul.f32 %v519, %v445
        %v575 = vmul.f32 %v519, %v446
        %v576 = vmul.f32 %v519, %v447
        %v577 = vmul.f32 %v519, %v448
        %v578 = vmul.f32 %v519, %v449
        %v579 = vmul.f32 %v519, %v450
        %v580 = vmul.f32 %v519, %v451
        %v581 = vmul.f32 %v519, %v452
        %v582 = vmul.f32 %v519, %v453
        %v583 = vmul.f32 %v519, %v454
        %v584 = vmul.f32 %v519, %v455
        %v585 = vmul.f32 %v519, %v456
        %v586 = vmul.f32 %v519, %v457
        %v587 = vmul.f32 %v519, %v458
        %v588 = vmul.f32 %v519, %v459
        %v589 = vmul.f32 %v519, %v460
        %v590 = vmul.f32 %v519, %v461
        %v591 = vmul.f32 %v519, %v462
        %v592 = vmul.f32 %v519, %v463
        %v593 = vmul.f32 %v519, %v464
        %v594 = vmul.f32 %v519, %v465
        %v595 = vmul.f32 %v519, %v466
        %v596 = vmul.f32 %v519, %v467
        %v597 = vmul.f32 %v519, %v468
        %v598 = vmul.f32 %v519, %v469
        %v599 = vmul.f32 %v519, %v470
        %v600 = vmul.f32 %v519, %v471
        %v601 = vmul.f32 %v519, %v472
        %v602 = vmul.f32 %v519, %v473
        %v603 = vmul.f32 %v519, %v474
        %v604 = vmul.f32 %v519, %v475
        %v605 = vmul.f32 %v519, %v476
        %v606 = vmul.f32 %v519, %v477
        %v607 = vmul.f32 %v519, %v478
        %v608 = vmul.f32 %v519, %v479
        %v609 = vmul.f32 %v519, %v480
        %v610 = vmul.f32 %v519, %v481
        %v611 = vmul.f32 %v519, %v482
        %v612 = vmul.f32 %v519, %v483
        %v613 = vmul.f32 %v519, %v484
        %v614 = vmul.f32 %v519, %v485
        %v615 = vmul.f32 %v519, %v486
        %v616 = vmul.f32 %v519, %v487
        %v617 = vmul.f32 %v519, %v488
        %v618 = vmul.f32 %v519, %v489
        %v619 = vmul.f32 %v519, %v490
        %v620 = vmul.f32 %v519, %v491
        %v621 = vmul.f32 %v519, %v492
        %v622 = vmul.f32 %v519, %v493
        %v623 = vmul.f32 %v519, %v494
        %v624 = vmul.f32 %v519, %v495
        %v625 = vmul.f32 %v519, %v496
        %v626 = vmul.f32 %v519, %v497
        %v627 = vmul.f32 %v519, %v498
        %v628 = vmul.f32 %v519, %v499
        %v629 = vmul.f32 %v519, %v500
        %v630 = vmul.f32 %v519, %v501
        %v631 = vmul.f32 %v519, %v502
        %v632 = vmul.f32 %v519, %v503
        %v633 = vmul.f32 %v519, %v504
        %v634 = vmul.f32 %v519, %v505
        %v635 = vmul.f32 %v519, %v506
        %v636 = vmul.f32 %v519, %v507
        %v637 = vmul.f32 %v519, %v508
        %v638 = vmul.f32 %v519, %v509
        %v639 = vmul.f32 %v519, %v510
        %v640 = vmul.f32 %v519, %v511
        %v641 = vmul.f32 %v519, %v512
        %v642 = vmul.f32 %v519, %v513
        %v643 = vmul.f32 %v519, %v514
        %v644 = vmul.f32 %v519, %v515
        %v645 = vmul.f32 %v519, %v516
        %v646 = vmul.f32 %v519, %v517
        %v647 = vmul.f32 %v519, %v518
        %v648 = vld [vmem:[%s283] sm:$0xff]
        %v649 = vld [vmem:[%s283 + $0x8] sm:$0xff]
        %v650 = vld [vmem:[%s283 + $0x10] sm:$0xff]
        %v651 = vld [vmem:[%s283 + $0x18] sm:$0xff]
        %v652 = vld [vmem:[%s283 + $0x20] sm:$0xff]
        %v653 = vld [vmem:[%s283 + $0x28] sm:$0xff]
        %v654 = vld [vmem:[%s283 + $0x30] sm:$0xff]
        %v655 = vld [vmem:[%s283 + $0x38] sm:$0xff]
        %v656 = vld [vmem:[%s283 + $0x40] sm:$0xff]
        %v657 = vld [vmem:[%s283 + $0x48] sm:$0xff]
        %v658 = vld [vmem:[%s283 + $0x50] sm:$0xff]
        %v659 = vld [vmem:[%s283 + $0x58] sm:$0xff]
        %v660 = vld [vmem:[%s283 + $0x60] sm:$0xff]
        %v661 = vld [vmem:[%s283 + $0x68] sm:$0xff]
        %v662 = vld [vmem:[%s283 + $0x70] sm:$0xff]
        %v663 = vld [vmem:[%s283 + $0x78] sm:$0xff]
        %v664 = vld [vmem:[%s283 + $0x80] sm:$0xff]
        %v665 = vld [vmem:[%s283 + $0x88] sm:$0xff]
        %v666 = vld [vmem:[%s283 + $0x90] sm:$0xff]
        %v667 = vld [vmem:[%s283 + $0x98] sm:$0xff]
        %v668 = vld [vmem:[%s283 + $0xa0] sm:$0xff]
        %v669 = vld [vmem:[%s283 + $0xa8] sm:$0xff]
        %v670 = vld [vmem:[%s283 + $0xb0] sm:$0xff]
        %v671 = vld [vmem:[%s283 + $0xb8] sm:$0xff]
        %v672 = vld [vmem:[%s283 + $0xc0] sm:$0xff]
        %v673 = vld [vmem:[%s283 + $0xc8] sm:$0xff]
        %v674 = vld [vmem:[%s283 + $0xd0] sm:$0xff]
        %v675 = vld [vmem:[%s283 + $0xd8] sm:$0xff]
        %v676 = vld [vmem:[%s283 + $0xe0] sm:$0xff]
        %v677 = vld [vmem:[%s283 + $0xe8] sm:$0xff]
        %v678 = vld [vmem:[%s283 + $0xf0] sm:$0xff]
        %v679 = vld [vmem:[%s283 + $0xf8] sm:$0xff]
        %v680 = vld [vmem:[%s283 + $0x100] sm:$0xff]
        %v681 = vld [vmem:[%s283 + $0x108] sm:$0xff]
        %v682 = vld [vmem:[%s283 + $0x110] sm:$0xff]
        %v683 = vld [vmem:[%s283 + $0x118] sm:$0xff]
        %v684 = vld [vmem:[%s283 + $0x120] sm:$0xff]
        %v685 = vld [vmem:[%s283 + $0x128] sm:$0xff]
        %v686 = vld [vmem:[%s283 + $0x130] sm:$0xff]
        %v687 = vld [vmem:[%s283 + $0x138] sm:$0xff]
        %v688 = vld [vmem:[%s283 + $0x140] sm:$0xff]
        %v689 = vld [vmem:[%s283 + $0x148] sm:$0xff]
        %v690 = vld [vmem:[%s283 + $0x150] sm:$0xff]
        %v691 = vld [vmem:[%s283 + $0x158] sm:$0xff]
        %v692 = vld [vmem:[%s283 + $0x160] sm:$0xff]
        %v693 = vld [vmem:[%s283 + $0x168] sm:$0xff]
        %v694 = vld [vmem:[%s283 + $0x170] sm:$0xff]
        %v695 = vld [vmem:[%s283 + $0x178] sm:$0xff]
        %v696 = vld [vmem:[%s283 + $0x180] sm:$0xff]
        %v697 = vld [vmem:[%s283 + $0x188] sm:$0xff]
        %v698 = vld [vmem:[%s283 + $0x190] sm:$0xff]
        %v699 = vld [vmem:[%s283 + $0x198] sm:$0xff]
        %v700 = vld [vmem:[%s283 + $0x1a0] sm:$0xff]
        %v701 = vld [vmem:[%s283 + $0x1a8] sm:$0xff]
        %v702 = vld [vmem:[%s283 + $0x1b0] sm:$0xff]
        %v703 = vld [vmem:[%s283 + $0x1b8] sm:$0xff]
        %v704 = vld [vmem:[%s283 + $0x1c0] sm:$0xff]
        %v705 = vld [vmem:[%s283 + $0x1c8] sm:$0xff]
        %v706 = vld [vmem:[%s283 + $0x1d0] sm:$0xff]
        %v707 = vld [vmem:[%s283 + $0x1d8] sm:$0xff]
        %v708 = vld [vmem:[%s283 + $0x1e0] sm:$0xff]
        %v709 = vld [vmem:[%s283 + $0x1e8] sm:$0xff]
        %v710 = vld [vmem:[%s283 + $0x1f0] sm:$0xff]
        %v711 = vld [vmem:[%s283 + $0x1f8] sm:$0xff]
        %v712 = vld [vmem:[%s283 + $0x200] sm:$0xff]
        %v713 = vld [vmem:[%s283 + $0x208] sm:$0xff]
        %v714 = vld [vmem:[%s283 + $0x210] sm:$0xff]
        %v715 = vld [vmem:[%s283 + $0x218] sm:$0xff]
        %v716 = vld [vmem:[%s283 + $0x220] sm:$0xff]
        %v717 = vld [vmem:[%s283 + $0x228] sm:$0xff]
        %v718 = vld [vmem:[%s283 + $0x230] sm:$0xff]
        %v719 = vld [vmem:[%s283 + $0x238] sm:$0xff]
        %v720 = vld [vmem:[%s283 + $0x240] sm:$0xff]
        %v721 = vld [vmem:[%s283 + $0x248] sm:$0xff]
        %v722 = vld [vmem:[%s283 + $0x250] sm:$0xff]
        %v723 = vld [vmem:[%s283 + $0x258] sm:$0xff]
        %v724 = vld [vmem:[%s283 + $0x260] sm:$0xff]
        %v725 = vld [vmem:[%s283 + $0x268] sm:$0xff]
        %v726 = vld [vmem:[%s283 + $0x270] sm:$0xff]
        %v727 = vld [vmem:[%s283 + $0x278] sm:$0xff]
        %v728 = vld [vmem:[%s283 + $0x280] sm:$0xff]
        %v729 = vld [vmem:[%s283 + $0x288] sm:$0xff]
        %v730 = vld [vmem:[%s283 + $0x290] sm:$0xff]
        %v731 = vld [vmem:[%s283 + $0x298] sm:$0xff]
        %v732 = vld [vmem:[%s283 + $0x2a0] sm:$0xff]
        %v733 = vld [vmem:[%s283 + $0x2a8] sm:$0xff]
        %v734 = vld [vmem:[%s283 + $0x2b0] sm:$0xff]
        %v735 = vld [vmem:[%s283 + $0x2b8] sm:$0xff]
        %v736 = vld [vmem:[%s283 + $0x2c0] sm:$0xff]
        %v737 = vld [vmem:[%s283 + $0x2c8] sm:$0xff]
        %v738 = vld [vmem:[%s283 + $0x2d0] sm:$0xff]
        %v739 = vld [vmem:[%s283 + $0x2d8] sm:$0xff]
        %v740 = vld [vmem:[%s283 + $0x2e0] sm:$0xff]
        %v741 = vld [vmem:[%s283 + $0x2e8] sm:$0xff]
        %v742 = vld [vmem:[%s283 + $0x2f0] sm:$0xff]
        %v743 = vld [vmem:[%s283 + $0x2f8] sm:$0xff]
        %v744 = vld [vmem:[%s283 + $0x300] sm:$0xff]
        %v745 = vld [vmem:[%s283 + $0x308] sm:$0xff]
        %v746 = vld [vmem:[%s283 + $0x310] sm:$0xff]
        %v747 = vld [vmem:[%s283 + $0x318] sm:$0xff]
        %v748 = vld [vmem:[%s283 + $0x320] sm:$0xff]
        %v749 = vld [vmem:[%s283 + $0x328] sm:$0xff]
        %v750 = vld [vmem:[%s283 + $0x330] sm:$0xff]
        %v751 = vld [vmem:[%s283 + $0x338] sm:$0xff]
        %v752 = vld [vmem:[%s283 + $0x340] sm:$0xff]
        %v753 = vld [vmem:[%s283 + $0x348] sm:$0xff]
        %v754 = vld [vmem:[%s283 + $0x350] sm:$0xff]
        %v755 = vld [vmem:[%s283 + $0x358] sm:$0xff]
        %v756 = vld [vmem:[%s283 + $0x360] sm:$0xff]
        %v757 = vld [vmem:[%s283 + $0x368] sm:$0xff]
        %v758 = vld [vmem:[%s283 + $0x370] sm:$0xff]
        %v759 = vld [vmem:[%s283 + $0x378] sm:$0xff]
        %v760 = vld [vmem:[%s283 + $0x380] sm:$0xff]
        %v761 = vld [vmem:[%s283 + $0x388] sm:$0xff]
        %v762 = vld [vmem:[%s283 + $0x390] sm:$0xff]
        %v763 = vld [vmem:[%s283 + $0x398] sm:$0xff]
        %v764 = vld [vmem:[%s283 + $0x3a0] sm:$0xff]
        %v765 = vld [vmem:[%s283 + $0x3a8] sm:$0xff]
        %v766 = vld [vmem:[%s283 + $0x3b0] sm:$0xff]
        %v767 = vld [vmem:[%s283 + $0x3b8] sm:$0xff]
        %v768 = vld [vmem:[%s283 + $0x3c0] sm:$0xff]
        %v769 = vld [vmem:[%s283 + $0x3c8] sm:$0xff]
        %v770 = vld [vmem:[%s283 + $0x3d0] sm:$0xff]
        %v771 = vld [vmem:[%s283 + $0x3d8] sm:$0xff]
        %v772 = vld [vmem:[%s283 + $0x3e0] sm:$0xff]
        %v773 = vld [vmem:[%s283 + $0x3e8] sm:$0xff]
        %v774 = vld [vmem:[%s283 + $0x3f0] sm:$0xff]
        %v775 = vld [vmem:[%s283 + $0x3f8] sm:$0xff]
        %v776 = vstv %s389
        %v777 = vmul.f32 %v776, %v648
        %v778 = vmul.f32 %v776, %v649
        %v779 = vmul.f32 %v776, %v650
        %v780 = vmul.f32 %v776, %v651
        %v781 = vmul.f32 %v776, %v652
        %v782 = vmul.f32 %v776, %v653
        %v783 = vmul.f32 %v776, %v654
        %v784 = vmul.f32 %v776, %v655
        %v785 = vmul.f32 %v776, %v656
        %v786 = vmul.f32 %v776, %v657
        %v787 = vmul.f32 %v776, %v658
        %v788 = vmul.f32 %v776, %v659
        %v789 = vmul.f32 %v776, %v660
        %v790 = vmul.f32 %v776, %v661
        %v791 = vmul.f32 %v776, %v662
        %v792 = vmul.f32 %v776, %v663
        %v793 = vmul.f32 %v776, %v664
        %v794 = vmul.f32 %v776, %v665
        %v795 = vmul.f32 %v776, %v666
        %v796 = vmul.f32 %v776, %v667
        %v797 = vmul.f32 %v776, %v668
        %v798 = vmul.f32 %v776, %v669
        %v799 = vmul.f32 %v776, %v670
        %v800 = vmul.f32 %v776, %v671
        %v801 = vmul.f32 %v776, %v672
        %v802 = vmul.f32 %v776, %v673
        %v803 = vmul.f32 %v776, %v674
        %v804 = vmul.f32 %v776, %v675
        %v805 = vmul.f32 %v776, %v676
        %v806 = vmul.f32 %v776, %v677
        %v807 = vmul.f32 %v776, %v678
        %v808 = vmul.f32 %v776, %v679
        %v809 = vmul.f32 %v776, %v680
        %v810 = vmul.f32 %v776, %v681
        %v811 = vmul.f32 %v776, %v682
        %v812 = vmul.f32 %v776, %v683
        %v813 = vmul.f32 %v776, %v684
        %v814 = vmul.f32 %v776, %v685
        %v815 = vmul.f32 %v776, %v686
        %v816 = vmul.f32 %v776, %v687
        %v817 = vmul.f32 %v776, %v688
        %v818 = vmul.f32 %v776, %v689
        %v819 = vmul.f32 %v776, %v690
        %v820 = vmul.f32 %v776, %v691
        %v821 = vmul.f32 %v776, %v692
        %v822 = vmul.f32 %v776, %v693
        %v823 = vmul.f32 %v776, %v694
        %v824 = vmul.f32 %v776, %v695
        %v825 = vmul.f32 %v776, %v696
        %v826 = vmul.f32 %v776, %v697
        %v827 = vmul.f32 %v776, %v698
        %v828 = vmul.f32 %v776, %v699
        %v829 = vmul.f32 %v776, %v700
        %v830 = vmul.f32 %v776, %v701
        %v831 = vmul.f32 %v776, %v702
        %v832 = vmul.f32 %v776, %v703
        %v833 = vmul.f32 %v776, %v704
        %v834 = vmul.f32 %v776, %v705
        %v835 = vmul.f32 %v776, %v706
        %v836 = vmul.f32 %v776, %v707
        %v837 = vmul.f32 %v776, %v708
        %v838 = vmul.f32 %v776, %v709
        %v839 = vmul.f32 %v776, %v710
        %v840 = vmul.f32 %v776, %v711
        %v841 = vmul.f32 %v776, %v712
        %v842 = vmul.f32 %v776, %v713
        %v843 = vmul.f32 %v776, %v714
        %v844 = vmul.f32 %v776, %v715
        %v845 = vmul.f32 %v776, %v716
        %v846 = vmul.f32 %v776, %v717
        %v847 = vmul.f32 %v776, %v718
        %v848 = vmul.f32 %v776, %v719
        %v849 = vmul.f32 %v776, %v720
        %v850 = vmul.f32 %v776, %v721
        %v851 = vmul.f32 %v776, %v722
        %v852 = vmul.f32 %v776, %v723
        %v853 = vmul.f32 %v776, %v724
        %v854 = vmul.f32 %v776, %v725
        %v855 = vmul.f32 %v776, %v726
        %v856 = vmul.f32 %v776, %v727
        %v857 = vmul.f32 %v776, %v728
        %v858 = vmul.f32 %v776, %v729
        %v859 = vmul.f32 %v776, %v730
        %v860 = vmul.f32 %v776, %v731
        %v861 = vmul.f32 %v776, %v732
        %v862 = vmul.f32 %v776, %v733
        %v863 = vmul.f32 %v776, %v734
        %v864 = vmul.f32 %v776, %v735
        %v865 = vmul.f32 %v776, %v736
        %v866 = vmul.f32 %v776, %v737
        %v867 = vmul.f32 %v776, %v738
        %v868 = vmul.f32 %v776, %v739
        %v869 = vmul.f32 %v776, %v740
        %v870 = vmul.f32 %v776, %v741
        %v871 = vmul.f32 %v776, %v742
        %v872 = vmul.f32 %v776, %v743
        %v873 = vmul.f32 %v776, %v744
        %v874 = vmul.f32 %v776, %v745
        %v875 = vmul.f32 %v776, %v746
        %v876 = vmul.f32 %v776, %v747
        %v877 = vmul.f32 %v776, %v748
        %v878 = vmul.f32 %v776, %v749
        %v879 = vmul.f32 %v776, %v750
        %v880 = vmul.f32 %v776, %v751
        %v881 = vmul.f32 %v776, %v752
        %v882 = vmul.f32 %v776, %v753
        %v883 = vmul.f32 %v776, %v754
        %v884 = vmul.f32 %v776, %v755
        %v885 = vmul.f32 %v776, %v756
        %v886 = vmul.f32 %v776, %v757
        %v887 = vmul.f32 %v776, %v758
        %v888 = vmul.f32 %v776, %v759
        %v889 = vmul.f32 %v776, %v760
        %v890 = vmul.f32 %v776, %v761
        %v891 = vmul.f32 %v776, %v762
        %v892 = vmul.f32 %v776, %v763
        %v893 = vmul.f32 %v776, %v764
        %v894 = vmul.f32 %v776, %v765
        %v895 = vmul.f32 %v776, %v766
        %v896 = vmul.f32 %v776, %v767
        %v897 = vmul.f32 %v776, %v768
        %v898 = vmul.f32 %v776, %v769
        %v899 = vmul.f32 %v776, %v770
        %v900 = vmul.f32 %v776, %v771
        %v901 = vmul.f32 %v776, %v772
        %v902 = vmul.f32 %v776, %v773
        %v903 = vmul.f32 %v776, %v774
        %v904 = vmul.f32 %v776, %v775
        %v905 = vadd.f32 %v520, %v777
        %v906 = vadd.f32 %v521, %v778
        %v907 = vadd.f32 %v522, %v779
        %v908 = vadd.f32 %v523, %v780
        %v909 = vadd.f32 %v524, %v781
        %v910 = vadd.f32 %v525, %v782
        %v911 = vadd.f32 %v526, %v783
        %v912 = vadd.f32 %v527, %v784
        %v913 = vadd.f32 %v528, %v785
        %v914 = vadd.f32 %v529, %v786
        %v915 = vadd.f32 %v530, %v787
        %v916 = vadd.f32 %v531, %v788
        %v917 = vadd.f32 %v532, %v789
        %v918 = vadd.f32 %v533, %v790
        %v919 = vadd.f32 %v534, %v791
        %v920 = vadd.f32 %v535, %v792
        %v921 = vadd.f32 %v536, %v793
        %v922 = vadd.f32 %v537, %v794
        %v923 = vadd.f32 %v538, %v795
        %v924 = vadd.f32 %v539, %v796
        %v925 = vadd.f32 %v540, %v797
        %v926 = vadd.f32 %v541, %v798
        %v927 = vadd.f32 %v542, %v799
        %v928 = vadd.f32 %v543, %v800
        %v929 = vadd.f32 %v544, %v801
        %v930 = vadd.f32 %v545, %v802
        %v931 = vadd.f32 %v546, %v803
        %v932 = vadd.f32 %v547, %v804
        %v933 = vadd.f32 %v548, %v805
        %v934 = vadd.f32 %v549, %v806
        %v935 = vadd.f32 %v550, %v807
        %v936 = vadd.f32 %v551, %v808
        %v937 = vadd.f32 %v552, %v809
        %v938 = vadd.f32 %v553, %v810
        %v939 = vadd.f32 %v554, %v811
        %v940 = vadd.f32 %v555, %v812
        %v941 = vadd.f32 %v556, %v813
        %v942 = vadd.f32 %v557, %v814
        %v943 = vadd.f32 %v558, %v815
        %v944 = vadd.f32 %v559, %v816
        %v945 = vadd.f32 %v560, %v817
        %v946 = vadd.f32 %v561, %v818
        %v947 = vadd.f32 %v562, %v819
        %v948 = vadd.f32 %v563, %v820
        %v949 = vadd.f32 %v564, %v821
        %v950 = vadd.f32 %v565, %v822
        %v951 = vadd.f32 %v566, %v823
        %v952 = vadd.f32 %v567, %v824
        %v953 = vadd.f32 %v568, %v825
        %v954 = vadd.f32 %v569, %v826
        %v955 = vadd.f32 %v570, %v827
        %v956 = vadd.f32 %v571, %v828
        %v957 = vadd.f32 %v572, %v829
        %v958 = vadd.f32 %v573, %v830
        %v959 = vadd.f32 %v574, %v831
        %v960 = vadd.f32 %v575, %v832
        %v961 = vadd.f32 %v576, %v833
        %v962 = vadd.f32 %v577, %v834
        %v963 = vadd.f32 %v578, %v835
        %v964 = vadd.f32 %v579, %v836
        %v965 = vadd.f32 %v580, %v837
        %v966 = vadd.f32 %v581, %v838
        %v967 = vadd.f32 %v582, %v839
        %v968 = vadd.f32 %v583, %v840
        %v969 = vadd.f32 %v584, %v841
        %v970 = vadd.f32 %v585, %v842
        %v971 = vadd.f32 %v586, %v843
        %v972 = vadd.f32 %v587, %v844
        %v973 = vadd.f32 %v588, %v845
        %v974 = vadd.f32 %v589, %v846
        %v975 = vadd.f32 %v590, %v847
        %v976 = vadd.f32 %v591, %v848
        %v977 = vadd.f32 %v592, %v849
        %v978 = vadd.f32 %v593, %v850
        %v979 = vadd.f32 %v594, %v851
        %v980 = vadd.f32 %v595, %v852
        %v981 = vadd.f32 %v596, %v853
        %v982 = vadd.f32 %v597, %v854
        %v983 = vadd.f32 %v598, %v855
        %v984 = vadd.f32 %v599, %v856
        %v985 = vadd.f32 %v600, %v857
        %v986 = vadd.f32 %v601, %v858
        %v987 = vadd.f32 %v602, %v859
        %v988 = vadd.f32 %v603, %v860
        %v989 = vadd.f32 %v604, %v861
        %v990 = vadd.f32 %v605, %v862
        %v991 = vadd.f32 %v606, %v863
        %v992 = vadd.f32 %v607, %v864
        %v993 = vadd.f32 %v608, %v865
        %v994 = vadd.f32 %v609, %v866
        %v995 = vadd.f32 %v610, %v867
        %v996 = vadd.f32 %v611, %v868
        %v997 = vadd.f32 %v612, %v869
        %v998 = vadd.f32 %v613, %v870
        %v999 = vadd.f32 %v614, %v871
        %v1000 = vadd.f32 %v615, %v872
        %v1001 = vadd.f32 %v616, %v873
        %v1002 = vadd.f32 %v617, %v874
        %v1003 = vadd.f32 %v618, %v875
        %v1004 = vadd.f32 %v619, %v876
        %v1005 = vadd.f32 %v620, %v877
        %v1006 = vadd.f32 %v621, %v878
        %v1007 = vadd.f32 %v622, %v879
        %v1008 = vadd.f32 %v623, %v880
        %v1009 = vadd.f32 %v624, %v881
        %v1010 = vadd.f32 %v625, %v882
        %v1011 = vadd.f32 %v626, %v883
        %v1012 = vadd.f32 %v627, %v884
        %v1013 = vadd.f32 %v628, %v885
        %v1014 = vadd.f32 %v629, %v886
        %v1015 = vadd.f32 %v630, %v887
        %v1016 = vadd.f32 %v631, %v888
        %v1017 = vadd.f32 %v632, %v889
        %v1018 = vadd.f32 %v633, %v890
        %v1019 = vadd.f32 %v634, %v891
        %v1020 = vadd.f32 %v635, %v892
        %v1021 = vadd.f32 %v636, %v893
        %v1022 = vadd.f32 %v637, %v894
        %v1023 = vadd.f32 %v638, %v895
        %v1024 = vadd.f32 %v639, %v896
        %v1025 = vadd.f32 %v640, %v897
        %v1026 = vadd.f32 %v641, %v898
        %v1027 = vadd.f32 %v642, %v899
        %v1028 = vadd.f32 %v643, %v900
        %v1029 = vadd.f32 %v644, %v901
        %v1030 = vadd.f32 %v645, %v902
        %v1031 = vadd.f32 %v646, %v903
        %v1032 = vadd.f32 %v647, %v904
        %v1033 = vld [vmem:[#allocation2] sm:$0xff]
        %v1034 = vld [vmem:[#allocation2 + $0x8] sm:$0xff]
        %v1035 = vld [vmem:[#allocation2 + $0x10] sm:$0xff]
        %v1036 = vld [vmem:[#allocation2 + $0x18] sm:$0xff]
        %v1037 = vld [vmem:[#allocation2 + $0x20] sm:$0xff]
        %v1038 = vld [vmem:[#allocation2 + $0x28] sm:$0xff]
        %v1039 = vld [vmem:[#allocation2 + $0x30] sm:$0xff]
        %v1040 = vld [vmem:[#allocation2 + $0x38] sm:$0xff]
        %v1041 = vld [vmem:[#allocation2 + $0x40] sm:$0xff]
        %v1042 = vld [vmem:[#allocation2 + $0x48] sm:$0xff]
        %v1043 = vld [vmem:[#allocation2 + $0x50] sm:$0xff]
        %v1044 = vld [vmem:[#allocation2 + $0x58] sm:$0xff]
        %v1045 = vld [vmem:[#allocation2 + $0x60] sm:$0xff]
        %v1046 = vld [vmem:[#allocation2 + $0x68] sm:$0xff]
        %v1047 = vld [vmem:[#allocation2 + $0x70] sm:$0xff]
        %v1048 = vld [vmem:[#allocation2 + $0x78] sm:$0xff]
        %v1049 = vld [vmem:[#allocation2 + $0x80] sm:$0xff]
        %v1050 = vld [vmem:[#allocation2 + $0x88] sm:$0xff]
        %v1051 = vld [vmem:[#allocation2 + $0x90] sm:$0xff]
        %v1052 = vld [vmem:[#allocation2 + $0x98] sm:$0xff]
        %v1053 = vld [vmem:[#allocation2 + $0xa0] sm:$0xff]
        %v1054 = vld [vmem:[#allocation2 + $0xa8] sm:$0xff]
        %v1055 = vld [vmem:[#allocation2 + $0xb0] sm:$0xff]
        %v1056 = vld [vmem:[#allocation2 + $0xb8] sm:$0xff]
        %v1057 = vld [vmem:[#allocation2 + $0xc0] sm:$0xff]
        %v1058 = vld [vmem:[#allocation2 + $0xc8] sm:$0xff]
        %v1059 = vld [vmem:[#allocation2 + $0xd0] sm:$0xff]
        %v1060 = vld [vmem:[#allocation2 + $0xd8] sm:$0xff]
        %v1061 = vld [vmem:[#allocation2 + $0xe0] sm:$0xff]
        %v1062 = vld [vmem:[#allocation2 + $0xe8] sm:$0xff]
        %v1063 = vld [vmem:[#allocation2 + $0xf0] sm:$0xff]
        %v1064 = vld [vmem:[#allocation2 + $0xf8] sm:$0xff]
        %v1065 = vld [vmem:[#allocation2 + $0x100] sm:$0xff]
        %v1066 = vld [vmem:[#allocation2 + $0x108] sm:$0xff]
        %v1067 = vld [vmem:[#allocation2 + $0x110] sm:$0xff]
        %v1068 = vld [vmem:[#allocation2 + $0x118] sm:$0xff]
        %v1069 = vld [vmem:[#allocation2 + $0x120] sm:$0xff]
        %v1070 = vld [vmem:[#allocation2 + $0x128] sm:$0xff]
        %v1071 = vld [vmem:[#allocation2 + $0x130] sm:$0xff]
        %v1072 = vld [vmem:[#allocation2 + $0x138] sm:$0xff]
        %v1073 = vld [vmem:[#allocation2 + $0x140] sm:$0xff]
        %v1074 = vld [vmem:[#allocation2 + $0x148] sm:$0xff]
        %v1075 = vld [vmem:[#allocation2 + $0x150] sm:$0xff]
        %v1076 = vld [vmem:[#allocation2 + $0x158] sm:$0xff]
        %v1077 = vld [vmem:[#allocation2 + $0x160] sm:$0xff]
        %v1078 = vld [vmem:[#allocation2 + $0x168] sm:$0xff]
        %v1079 = vld [vmem:[#allocation2 + $0x170] sm:$0xff]
        %v1080 = vld [vmem:[#allocation2 + $0x178] sm:$0xff]
        %v1081 = vld [vmem:[#allocation2 + $0x180] sm:$0xff]
        %v1082 = vld [vmem:[#allocation2 + $0x188] sm:$0xff]
        %v1083 = vld [vmem:[#allocation2 + $0x190] sm:$0xff]
        %v1084 = vld [vmem:[#allocation2 + $0x198] sm:$0xff]
        %v1085 = vld [vmem:[#allocation2 + $0x1a0] sm:$0xff]
        %v1086 = vld [vmem:[#allocation2 + $0x1a8] sm:$0xff]
        %v1087 = vld [vmem:[#allocation2 + $0x1b0] sm:$0xff]
        %v1088 = vld [vmem:[#allocation2 + $0x1b8] sm:$0xff]
        %v1089 = vld [vmem:[#allocation2 + $0x1c0] sm:$0xff]
        %v1090 = vld [vmem:[#allocation2 + $0x1c8] sm:$0xff]
        %v1091 = vld [vmem:[#allocation2 + $0x1d0] sm:$0xff]
        %v1092 = vld [vmem:[#allocation2 + $0x1d8] sm:$0xff]
        %v1093 = vld [vmem:[#allocation2 + $0x1e0] sm:$0xff]
        %v1094 = vld [vmem:[#allocation2 + $0x1e8] sm:$0xff]
        %v1095 = vld [vmem:[#allocation2 + $0x1f0] sm:$0xff]
        %v1096 = vld [vmem:[#allocation2 + $0x1f8] sm:$0xff]
        %v1097 = vld [vmem:[#allocation4] sm:$0xff]
        %v1098 = vld [vmem:[#allocation4 + $0x8] sm:$0xff]
        %v1099 = vld [vmem:[#allocation4 + $0x10] sm:$0xff]
        %v1100 = vld [vmem:[#allocation4 + $0x18] sm:$0xff]
        %v1101 = vld [vmem:[#allocation4 + $0x20] sm:$0xff]
        %v1102 = vld [vmem:[#allocation4 + $0x28] sm:$0xff]
        %v1103 = vld [vmem:[#allocation4 + $0x30] sm:$0xff]
        %v1104 = vld [vmem:[#allocation4 + $0x38] sm:$0xff]
        %v1105 = vld [vmem:[#allocation4 + $0x40] sm:$0xff]
        %v1106 = vld [vmem:[#allocation4 + $0x48] sm:$0xff]
        %v1107 = vld [vmem:[#allocation4 + $0x50] sm:$0xff]
        %v1108 = vld [vmem:[#allocation4 + $0x58] sm:$0xff]
        %v1109 = vld [vmem:[#allocation4 + $0x60] sm:$0xff]
        %v1110 = vld [vmem:[#allocation4 + $0x68] sm:$0xff]
        %v1111 = vld [vmem:[#allocation4 + $0x70] sm:$0xff]
        %v1112 = vld [vmem:[#allocation4 + $0x78] sm:$0xff]
        %v1113 = vld [vmem:[#allocation4 + $0x80] sm:$0xff]
        %v1114 = vld [vmem:[#allocation4 + $0x88] sm:$0xff]
        %v1115 = vld [vmem:[#allocation4 + $0x90] sm:$0xff]
        %v1116 = vld [vmem:[#allocation4 + $0x98] sm:$0xff]
        %v1117 = vld [vmem:[#allocation4 + $0xa0] sm:$0xff]
        %v1118 = vld [vmem:[#allocation4 + $0xa8] sm:$0xff]
        %v1119 = vld [vmem:[#allocation4 + $0xb0] sm:$0xff]
        %v1120 = vld [vmem:[#allocation4 + $0xb8] sm:$0xff]
        %v1121 = vld [vmem:[#allocation4 + $0xc0] sm:$0xff]
        %v1122 = vld [vmem:[#allocation4 + $0xc8] sm:$0xff]
        %v1123 = vld [vmem:[#allocation4 + $0xd0] sm:$0xff]
        %v1124 = vld [vmem:[#allocation4 + $0xd8] sm:$0xff]
        %v1125 = vld [vmem:[#allocation4 + $0xe0] sm:$0xff]
        %v1126 = vld [vmem:[#allocation4 + $0xe8] sm:$0xff]
        %v1127 = vld [vmem:[#allocation4 + $0xf0] sm:$0xff]
        %v1128 = vld [vmem:[#allocation4 + $0xf8] sm:$0xff]
        %v1129 = vld [vmem:[#allocation4 + $0x100] sm:$0xff]
        %v1130 = vld [vmem:[#allocation4 + $0x108] sm:$0xff]
        %v1131 = vld [vmem:[#allocation4 + $0x110] sm:$0xff]
        %v1132 = vld [vmem:[#allocation4 + $0x118] sm:$0xff]
        %v1133 = vld [vmem:[#allocation4 + $0x120] sm:$0xff]
        %v1134 = vld [vmem:[#allocation4 + $0x128] sm:$0xff]
        %v1135 = vld [vmem:[#allocation4 + $0x130] sm:$0xff]
        %v1136 = vld [vmem:[#allocation4 + $0x138] sm:$0xff]
        %v1137 = vld [vmem:[#allocation4 + $0x140] sm:$0xff]
        %v1138 = vld [vmem:[#allocation4 + $0x148] sm:$0xff]
        %v1139 = vld [vmem:[#allocation4 + $0x150] sm:$0xff]
        %v1140 = vld [vmem:[#allocation4 + $0x158] sm:$0xff]
        %v1141 = vld [vmem:[#allocation4 + $0x160] sm:$0xff]
        %v1142 = vld [vmem:[#allocation4 + $0x168] sm:$0xff]
        %v1143 = vld [vmem:[#allocation4 + $0x170] sm:$0xff]
        %v1144 = vld [vmem:[#allocation4 + $0x178] sm:$0xff]
        %v1145 = vld [vmem:[#allocation4 + $0x180] sm:$0xff]
        %v1146 = vld [vmem:[#allocation4 + $0x188] sm:$0xff]
        %v1147 = vld [vmem:[#allocation4 + $0x190] sm:$0xff]
        %v1148 = vld [vmem:[#allocation4 + $0x198] sm:$0xff]
        %v1149 = vld [vmem:[#allocation4 + $0x1a0] sm:$0xff]
        %v1150 = vld [vmem:[#allocation4 + $0x1a8] sm:$0xff]
        %v1151 = vld [vmem:[#allocation4 + $0x1b0] sm:$0xff]
        %v1152 = vld [vmem:[#allocation4 + $0x1b8] sm:$0xff]
        %v1153 = vld [vmem:[#allocation4 + $0x1c0] sm:$0xff]
        %v1154 = vld [vmem:[#allocation4 + $0x1c8] sm:$0xff]
        %v1155 = vld [vmem:[#allocation4 + $0x1d0] sm:$0xff]
        %v1156 = vld [vmem:[#allocation4 + $0x1d8] sm:$0xff]
        %v1157 = vld [vmem:[#allocation4 + $0x1e0] sm:$0xff]
        %v1158 = vld [vmem:[#allocation4 + $0x1e8] sm:$0xff]
        %v1159 = vld [vmem:[#allocation4 + $0x1f0] sm:$0xff]
        %v1160 = vld [vmem:[#allocation4 + $0x1f8] sm:$0xff]
        %v1161 = vld [vmem:[#allocation4 + $0x200] sm:$0xff]
        %v1162 = vld [vmem:[#allocation4 + $0x208] sm:$0xff]
        %v1163 = vld [vmem:[#allocation4 + $0x210] sm:$0xff]
        %v1164 = vld [vmem:[#allocation4 + $0x218] sm:$0xff]
        %v1165 = vld [vmem:[#allocation4 + $0x220] sm:$0xff]
        %v1166 = vld [vmem:[#allocation4 + $0x228] sm:$0xff]
        %v1167 = vld [vmem:[#allocation4 + $0x230] sm:$0xff]
        %v1168 = vld [vmem:[#allocation4 + $0x238] sm:$0xff]
        %v1169 = vld [vmem:[#allocation4 + $0x240] sm:$0xff]
        %v1170 = vld [vmem:[#allocation4 + $0x248] sm:$0xff]
        %v1171 = vld [vmem:[#allocation4 + $0x250] sm:$0xff]
        %v1172 = vld [vmem:[#allocation4 + $0x258] sm:$0xff]
        %v1173 = vld [vmem:[#allocation4 + $0x260] sm:$0xff]
        %v1174 = vld [vmem:[#allocation4 + $0x268] sm:$0xff]
        %v1175 = vld [vmem:[#allocation4 + $0x270] sm:$0xff]
        %v1176 = vld [vmem:[#allocation4 + $0x278] sm:$0xff]
        %v1177 = vld [vmem:[#allocation4 + $0x280] sm:$0xff]
        %v1178 = vld [vmem:[#allocation4 + $0x288] sm:$0xff]
        %v1179 = vld [vmem:[#allocation4 + $0x290] sm:$0xff]
        %v1180 = vld [vmem:[#allocation4 + $0x298] sm:$0xff]
        %v1181 = vld [vmem:[#allocation4 + $0x2a0] sm:$0xff]
        %v1182 = vld [vmem:[#allocation4 + $0x2a8] sm:$0xff]
        %v1183 = vld [vmem:[#allocation4 + $0x2b0] sm:$0xff]
        %v1184 = vld [vmem:[#allocation4 + $0x2b8] sm:$0xff]
        %v1185 = vld [vmem:[#allocation4 + $0x2c0] sm:$0xff]
        %v1186 = vld [vmem:[#allocation4 + $0x2c8] sm:$0xff]
        %v1187 = vld [vmem:[#allocation4 + $0x2d0] sm:$0xff]
        %v1188 = vld [vmem:[#allocation4 + $0x2d8] sm:$0xff]
        %v1189 = vld [vmem:[#allocation4 + $0x2e0] sm:$0xff]
        %v1190 = vld [vmem:[#allocation4 + $0x2e8] sm:$0xff]
        %v1191 = vld [vmem:[#allocation4 + $0x2f0] sm:$0xff]
        %v1192 = vld [vmem:[#allocation4 + $0x2f8] sm:$0xff]
        %v1193 = vld [vmem:[#allocation4 + $0x300] sm:$0xff]
        %v1194 = vld [vmem:[#allocation4 + $0x308] sm:$0xff]
        %v1195 = vld [vmem:[#allocation4 + $0x310] sm:$0xff]
        %v1196 = vld [vmem:[#allocation4 + $0x318] sm:$0xff]
        %v1197 = vld [vmem:[#allocation4 + $0x320] sm:$0xff]
        %v1198 = vld [vmem:[#allocation4 + $0x328] sm:$0xff]
        %v1199 = vld [vmem:[#allocation4 + $0x330] sm:$0xff]
        %v1200 = vld [vmem:[#allocation4 + $0x338] sm:$0xff]
        %v1201 = vld [vmem:[#allocation4 + $0x340] sm:$0xff]
        %v1202 = vld [vmem:[#allocation4 + $0x348] sm:$0xff]
        %v1203 = vld [vmem:[#allocation4 + $0x350] sm:$0xff]
        %v1204 = vld [vmem:[#allocation4 + $0x358] sm:$0xff]
        %v1205 = vld [vmem:[#allocation4 + $0x360] sm:$0xff]
        %v1206 = vld [vmem:[#allocation4 + $0x368] sm:$0xff]
        %v1207 = vld [vmem:[#allocation4 + $0x370] sm:$0xff]
        %v1208 = vld [vmem:[#allocation4 + $0x378] sm:$0xff]
        %v1209 = vld [vmem:[#allocation4 + $0x380] sm:$0xff]
        %v1210 = vld [vmem:[#allocation4 + $0x388] sm:$0xff]
        %v1211 = vld [vmem:[#allocation4 + $0x390] sm:$0xff]
        %v1212 = vld [vmem:[#allocation4 + $0x398] sm:$0xff]
        %v1213 = vld [vmem:[#allocation4 + $0x3a0] sm:$0xff]
        %v1214 = vld [vmem:[#allocation4 + $0x3a8] sm:$0xff]
        %v1215 = vld [vmem:[#allocation4 + $0x3b0] sm:$0xff]
        %v1216 = vld [vmem:[#allocation4 + $0x3b8] sm:$0xff]
        %v1217 = vld [vmem:[#allocation4 + $0x3c0] sm:$0xff]
        %v1218 = vld [vmem:[#allocation4 + $0x3c8] sm:$0xff]
        %v1219 = vld [vmem:[#allocation4 + $0x3d0] sm:$0xff]
        %v1220 = vld [vmem:[#allocation4 + $0x3d8] sm:$0xff]
        %v1221 = vld [vmem:[#allocation4 + $0x3e0] sm:$0xff]
        %v1222 = vld [vmem:[#allocation4 + $0x3e8] sm:$0xff]
        %v1223 = vld [vmem:[#allocation4 + $0x3f0] sm:$0xff]
        %v1224 = vld [vmem:[#allocation4 + $0x3f8] sm:$0xff]
        %1225 = vmatprep.subr.mxu0 %v906
        %1226 = vmatpush1.msra.mxu0 %v905
        %1227 = vmatprep.subr.mxu0 %v908
        %1228 = vmatpush1.msra.mxu0 %v907
        %1229 = vmatprep.subr.mxu0 %v910
        %1230 = vmatpush1.msra.mxu0 %v909
        %1231 = vmatprep.subr.mxu0 %v912
        %1232 = vmatpush1.msra.mxu0 %v911
        %1233 = vmatprep.subr.mxu0 %v914
        %1234 = vmatpush1.msra.mxu0 %v913
        %1235 = vmatprep.subr.mxu0 %v916
        %1236 = vmatpush1.msra.mxu0 %v915
        %1237 = vmatprep.subr.mxu0 %v918
        %1238 = vmatpush1.msra.mxu0 %v917
        %1239 = vmatprep.subr.mxu0 %v920
        %1240 = vmatpush1.msra.mxu0 %v919
        %1241 = vmatprep.subr.mxu0 %v922
        %1242 = vmatpush1.msra.mxu0 %v921
        %1243 = vmatprep.subr.mxu0 %v924
        %1244 = vmatpush1.msra.mxu0 %v923
        %1245 = vmatprep.subr.mxu0 %v926
        %1246 = vmatpush1.msra.mxu0 %v925
        %1247 = vmatprep.subr.mxu0 %v928
        %1248 = vmatpush1.msra.mxu0 %v927
        %1249 = vmatprep.subr.mxu0 %v930
        %1250 = vmatpush1.msra.mxu0 %v929
        %1251 = vmatprep.subr.mxu0 %v932
        %1252 = vmatpush1.msra.mxu0 %v931
        %1253 = vmatprep.subr.mxu0 %v934
        %1254 = vmatpush1.msra.mxu0 %v933
        %1255 = vmatprep.subr.mxu0 %v936
        %1256 = vmatpush1.msra.mxu0 %v935
        %1257 = vmatprep.subr.mxu0 %v938
        %1258 = vmatpush1.msra.mxu0 %v937
        %1259 = vmatprep.subr.mxu0 %v940
        %1260 = vmatpush1.msra.mxu0 %v939
        %1261 = vmatprep.subr.mxu0 %v942
        %1262 = vmatpush1.msra.mxu0 %v941
        %1263 = vmatprep.subr.mxu0 %v944
        %1264 = vmatpush1.msra.mxu0 %v943
        %1265 = vmatprep.subr.mxu0 %v946
        %1266 = vmatpush1.msra.mxu0 %v945
        %1267 = vmatprep.subr.mxu0 %v948
        %1268 = vmatpush1.msra.mxu0 %v947
        %1269 = vmatprep.subr.mxu0 %v950
        %1270 = vmatpush1.msra.mxu0 %v949
        %1271 = vmatprep.subr.mxu0 %v952
        %1272 = vmatpush1.msra.mxu0 %v951
        %1273 = vmatprep.subr.mxu0 %v954
        %1274 = vmatpush1.msra.mxu0 %v953
        %1275 = vmatprep.subr.mxu0 %v956
        %1276 = vmatpush1.msra.mxu0 %v955
        %1277 = vmatprep.subr.mxu0 %v958
        %1278 = vmatpush1.msra.mxu0 %v957
        %1279 = vmatprep.subr.mxu0 %v960
        %1280 = vmatpush1.msra.mxu0 %v959
        %1281 = vmatprep.subr.mxu0 %v962
        %1282 = vmatpush1.msra.mxu0 %v961
        %1283 = vmatprep.subr.mxu0 %v964
        %1284 = vmatpush1.msra.mxu0 %v963
        %1285 = vmatprep.subr.mxu0 %v966
        %1286 = vmatpush1.msra.mxu0 %v965
        %1287 = vmatprep.subr.mxu0 %v968
        %1288 = vmatpush1.msra.mxu0 %v967
        %1289 = vmatprep.mubr.f32.mxu0 %v1098
        %1290 = vmatmul.mubr.f32.gmra.mrb[0].mxu0 %v1097
        %v1291 = vpop.f32.mrb[0].mxu0
        %v1292 = vadd.f32 0.0, %v1291
        %v1293 = vpop.f32.mrb[0].mxu0
        %v1294 = vadd.f32 0.0, %v1293
        %1295 = vmatprep.mubr.f32.mxu0 %v1102
        %1296 = vmatmul.mubr.f32.gmra.mrb[0].mxu0 %v1101
        %v1297 = vpop.f32.mrb[0].mxu0
        %v1298 = vadd.f32 0.0, %v1297
        %v1299 = vpop.f32.mrb[0].mxu0
        %v1300 = vadd.f32 0.0, %v1299
        %1301 = vmatprep.mubr.f32.mxu0 %v1106
        %1302 = vmatmul.mubr.f32.gmra.mrb[0].mxu0 %v1105
        %v1303 = vpop.f32.mrb[0].mxu0
        %v1304 = vadd.f32 0.0, %v1303
        %v1305 = vpop.f32.mrb[0].mxu0
        %v1306 = vadd.f32 0.0, %v1305
        %1307 = vmatprep.mubr.f32.mxu0 %v1110
        %1308 = vmatmul.mubr.f32.gmra.mrb[0].mxu0 %v1109
        %v1309 = vpop.f32.mrb[0].mxu0
        %v1310 = vadd.f32 0.0, %v1309
        %v1311 = vpop.f32.mrb[0].mxu0
        %v1312 = vadd.f32 0.0, %v1311
        %1313 = vmatprep.mubr.f32.mxu0 %v1114
        %1314 = vmatmul.mubr.f32.gmra.mrb[0].mxu0 %v1113
        %v1315 = vpop.f32.mrb[0].mxu0
        %v1316 = vadd.f32 0.0, %v1315
        %v1317 = vpop.f32.mrb[0].mxu0
        %v1318 = vadd.f32 0.0, %v1317
        %1319 = vmatprep.mubr.f32.mxu0 %v1118
        %1320 = vmatmul.mubr.f32.gmra.mrb[0].mxu0 %v1117
        %v1321 = vpop.f32.mrb[0].mxu0
        %v1322 = vadd.f32 0.0, %v1321
        %v1323 = vpop.f32.mrb[0].mxu0
        %v1324 = vadd.f32 0.0, %v1323
        %1325 = vmatprep.mubr.f32.mxu0 %v1122
        %1326 = vmatmul.mubr.f32.gmra.mrb[0].mxu0 %v1121
        %v1327 = vpop.f32.mrb[0].mxu0
        %v1328 = vadd.f32 0.0, %v1327
        %v1329 = vpop.f32.mrb[0].mxu0
        %v1330 = vadd.f32 0.0, %v1329
        %1331 = vmatprep.mubr.f32.mxu0 %v1126
        %1332 = vmatmul.mubr.f32.gmra.mrb[0].mxu0 %v1125
        %v1333 = vpop.f32.mrb[0].mxu0
        %v1334 = vadd.f32 0.0, %v1333
        %v1335 = vpop.f32.mrb[0].mxu0
        %v1336 = vadd.f32 0.0, %v1335
        %1337 = vmatprep.mubr.f32.mxu0 %v1130
        %1338 = vmatmul.mubr.f32.gmra.mrb[0].mxu0 %v1129
        %v1339 = vpop.f32.mrb[0].mxu0
        %v1340 = vadd.f32 0.0, %v1339
        %v1341 = vpop.f32.mrb[0].mxu0
        %v1342 = vadd.f32 0.0, %v1341
        %1343 = vmatprep.mubr.f32.mxu0 %v1134
        %1344 = vmatmul.mubr.f32.gmra.mrb[0].mxu0 %v1133
        %v1345 = vpop.f32.mrb[0].mxu0
        %v1346 = vadd.f32 0.0, %v1345
        %v1347 = vpop.f32.mrb[0].mxu0
        %v1348 = vadd.f32 0.0, %v1347
        %1349 = vmatprep.mubr.f32.mxu0 %v1138
        %1350 = vmatmul.mubr.f32.gmra.mrb[0].mxu0 %v1137
        %v1351 = vpop.f32.mrb[0].mxu0
        %v1352 = vadd.f32 0.0, %v1351
        %v1353 = vpop.f32.mrb[0].mxu0
        %v1354 = vadd.f32 0.0, %v1353
        %1355 = vmatprep.mubr.f32.mxu0 %v1142
        %1356 = vmatmul.mubr.f32.gmra.mrb[0].mxu0 %v1141
        %v1357 = vpop.f32.mrb[0].mxu0
        %v1358 = vadd.f32 0.0, %v1357
        %v1359 = vpop.f32.mrb[0].mxu0
        %v1360 = vadd.f32 0.0, %v1359
        %1361 = vmatprep.mubr.f32.mxu0 %v1146
        %1362 = vmatmul.mubr.f32.gmra.mrb[0].mxu0 %v1145
        %v1363 = vpop.f32.mrb[0].mxu0
        %v1364 = vadd.f32 0.0, %v1363
        %v1365 = vpop.f32.mrb[0].mxu0
        %v1366 = vadd.f32 0.0, %v1365
        %1367 = vmatprep.mubr.f32.mxu0 %v1150
        %1368 = vmatmul.mubr.f32.gmra.mrb[0].mxu0 %v1149
        %v1369 = vpop.f32.mrb[0].mxu0
        %v1370 = vadd.f32 0.0, %v1369
        %v1371 = vpop.f32.mrb[0].mxu0
        %v1372 = vadd.f32 0.0, %v1371
        %1373 = vmatprep.mubr.f32.mxu0 %v1154
        %1374 = vmatmul.mubr.f32.gmra.mrb[0].mxu0 %v1153
        %v1375 = vpop.f32.mrb[0].mxu0
        %v1376 = vadd.f32 0.0, %v1375
        %v1377 = vpop.f32.mrb[0].mxu0
        %v1378 = vadd.f32 0.0, %v1377
        %1379 = vmatprep.mubr.f32.mxu0 %v1158
        %1380 = vmatmul.mubr.f32.gmra.mrb[0].mxu0 %v1157
        %v1381 = vpop.f32.mrb[0].mxu0
        %v1382 = vadd.f32 0.0, %v1381
        %v1383 = vpop.f32.mrb[0].mxu0
        %v1384 = vadd.f32 0.0, %v1383
        %1385 = vmatprep.mubr.f32.mxu0 %v1162
        %1386 = vmatmul.mubr.f32.gmra.mrb[0].mxu0 %v1161
        %v1387 = vpop.f32.mrb[0].mxu0
        %v1388 = vadd.f32 0.0, %v1387
        %v1389 = vpop.f32.mrb[0].mxu0
        %v1390 = vadd.f32 0.0, %v1389
        %1391 = vmatprep.mubr.f32.mxu0 %v1166
        %1392 = vmatmul.mubr.f32.gmra.mrb[0].mxu0 %v1165
        %v1393 = vpop.f32.mrb[0].mxu0
        %v1394 = vadd.f32 0.0, %v1393
        %v1395 = vpop.f32.mrb[0].mxu0
        %v1396 = vadd.f32 0.0, %v1395
        %1397 = vmatprep.mubr.f32.mxu0 %v1170
        %1398 = vmatmul.mubr.f32.gmra.mrb[0].mxu0 %v1169
        %v1399 = vpop.f32.mrb[0].mxu0
        %v1400 = vadd.f32 0.0, %v1399
        %v1401 = vpop.f32.mrb[0].mxu0
        %v1402 = vadd.f32 0.0, %v1401
        %1403 = vmatprep.mubr.f32.mxu0 %v1174
        %1404 = vmatmul.mubr.f32.gmra.mrb[0].mxu0 %v1173
        %v1405 = vpop.f32.mrb[0].mxu0
        %v1406 = vadd.f32 0.0, %v1405
        %v1407 = vpop.f32.mrb[0].mxu0
        %v1408 = vadd.f32 0.0, %v1407
        %1409 = vmatprep.mubr.f32.mxu0 %v1178
        %1410 = vmatmul.mubr.f32.gmra.mrb[0].mxu0 %v1177
        %v1411 = vpop.f32.mrb[0].mxu0
        %v1412 = vadd.f32 0.0, %v1411
        %v1413 = vpop.f32.mrb[0].mxu0
        %v1414 = vadd.f32 0.0, %v1413
        %1415 = vmatprep.mubr.f32.mxu0 %v1182
        %1416 = vmatmul.mubr.f32.gmra.mrb[0].mxu0 %v1181
        %v1417 = vpop.f32.mrb[0].mxu0
        %v1418 = vadd.f32 0.0, %v1417
        %v1419 = vpop.f32.mrb[0].mxu0
        %v1420 = vadd.f32 0.0, %v1419
        %1421 = vmatprep.mubr.f32.mxu0 %v1186
        %1422 = vmatmul.mubr.f32.gmra.mrb[0].mxu0 %v1185
        %v1423 = vpop.f32.mrb[0].mxu0
        %v1424 = vadd.f32 0.0, %v1423
        %v1425 = vpop.f32.mrb[0].mxu0
        %v1426 = vadd.f32 0.0, %v1425
        %1427 = vmatprep.mubr.f32.mxu0 %v1190
        %1428 = vmatmul.mubr.f32.gmra.mrb[0].mxu0 %v1189
        %v1429 = vpop.f32.mrb[0].mxu0
        %v1430 = vadd.f32 0.0, %v1429
        %v1431 = vpop.f32.mrb[0].mxu0
        %v1432 = vadd.f32 0.0, %v1431
        %1433 = vmatprep.mubr.f32.mxu0 %v1194
        %1434 = vmatmul.mubr.f32.gmra.mrb[0].mxu0 %v1193
        %v1435 = vpop.f32.mrb[0].mxu0
        %v1436 = vadd.f32 0.0, %v1435
        %v1437 = vpop.f32.mrb[0].mxu0
        %v1438 = vadd.f32 0.0, %v1437
        %1439 = vmatprep.mubr.f32.mxu0 %v1198
        %1440 = vmatmul.mubr.f32.gmra.mrb[0].mxu0 %v1197
        %v1441 = vpop.f32.mrb[0].mxu0
        %v1442 = vadd.f32 0.0, %v1441
        %v1443 = vpop.f32.mrb[0].mxu0
        %v1444 = vadd.f32 0.0, %v1443
        %1445 = vmatprep.mubr.f32.mxu0 %v1202
        %1446 = vmatmul.mubr.f32.gmra.mrb[0].mxu0 %v1201
        %v1447 = vpop.f32.mrb[0].mxu0
        %v1448 = vadd.f32 0.0, %v1447
        %v1449 = vpop.f32.mrb[0].mxu0
        %v1450 = vadd.f32 0.0, %v1449
        %1451 = vmatprep.mubr.f32.mxu0 %v1206
        %1452 = vmatmul.mubr.f32.gmra.mrb[0].mxu0 %v1205
        %v1453 = vpop.f32.mrb[0].mxu0
        %v1454 = vadd.f32 0.0, %v1453
        %v1455 = vpop.f32.mrb[0].mxu0
        %v1456 = vadd.f32 0.0, %v1455
        %1457 = vmatprep.mubr.f32.mxu0 %v1210
        %1458 = vmatmul.mubr.f32.gmra.mrb[0].mxu0 %v1209
        %v1459 = vpop.f32.mrb[0].mxu0
        %v1460 = vadd.f32 0.0, %v1459
        %v1461 = vpop.f32.mrb[0].mxu0
        %v1462 = vadd.f32 0.0, %v1461
        %1463 = vmatprep.mubr.f32.mxu0 %v1214
        %1464 = vmatmul.mubr.f32.gmra.mrb[0].mxu0 %v1213
        %v1465 = vpop.f32.mrb[0].mxu0
        %v1466 = vadd.f32 0.0, %v1465
        %v1467 = vpop.f32.mrb[0].mxu0
        %v1468 = vadd.f32 0.0, %v1467
        %1469 = vmatprep.mubr.f32.mxu0 %v1218
        %1470 = vmatmul.mubr.f32.gmra.mrb[0].mxu0 %v1217
        %v1471 = vpop.f32.mrb[0].mxu0
        %v1472 = vadd.f32 0.0, %v1471
        %v1473 = vpop.f32.mrb[0].mxu0
        %v1474 = vadd.f32 0.0, %v1473
        %1475 = vmatprep.mubr.f32.mxu0 %v1222
        %1476 = vmatmul.mubr.f32.gmra.mrb[0].mxu0 %v1221
        %v1477 = vpop.f32.mrb[0].mxu0
        %v1478 = vadd.f32 0.0, %v1477
        %v1479 = vpop.f32.mrb[0].mxu0
        %v1480 = vadd.f32 0.0, %v1479
        %1481 = vdwg.mxu0
        %1482 = vmatprep.subr.mxu0 %v970
        %1483 = vmatpush1.msra.mxu0 %v969
        %1484 = vmatprep.subr.mxu0 %v972
        %1485 = vmatpush1.msra.mxu0 %v971
        %1486 = vmatprep.subr.mxu0 %v974
        %1487 = vmatpush1.msra.mxu0 %v973
        %1488 = vmatprep.subr.mxu0 %v976
        %1489 = vmatpush1.msra.mxu0 %v975
        %1490 = vmatprep.subr.mxu0 %v978
        %1491 = vmatpush1.msra.mxu0 %v977
        %1492 = vmatprep.subr.mxu0 %v980
        %1493 = vmatpush1.msra.mxu0 %v979
        %1494 = vmatprep.subr.mxu0 %v982
        %1495 = vmatpush1.msra.mxu0 %v981
        %1496 = vmatprep.subr.mxu0 %v984
        %1497 = vmatpush1.msra.mxu0 %v983
        %1498 = vmatprep.subr.mxu0 %v986
        %1499 = vmatpush1.msra.mxu0 %v985
        %1500 = vmatprep.subr.mxu0 %v988
        %1501 = vmatpush1.msra.mxu0 %v987
        %1502 = vmatprep.subr.mxu0 %v990
        %1503 = vmatpush1.msra.mxu0 %v989
        %1504 = vmatprep.subr.mxu0 %v992
        %1505 = vmatpush1.msra.mxu0 %v991
        %1506 = vmatprep.subr.mxu0 %v994
        %1507 = vmatpush1.msra.mxu0 %v993
        %1508 = vmatprep.subr.mxu0 %v996
        %1509 = vmatpush1.msra.mxu0 %v995
        %1510 = vmatprep.subr.mxu0 %v998
        %1511 = vmatpush1.msra.mxu0 %v997
        %1512 = vmatprep.subr.mxu0 %v1000
        %1513 = vmatpush1.msra.mxu0 %v999
        %1514 = vmatprep.subr.mxu0 %v1002
        %1515 = vmatpush1.msra.mxu0 %v1001
        %1516 = vmatprep.subr.mxu0 %v1004
        %1517 = vmatpush1.msra.mxu0 %v1003
        %1518 = vmatprep.subr.mxu0 %v1006
        %1519 = vmatpush1.msra.mxu0 %v1005
        %1520 = vmatprep.subr.mxu0 %v1008
        %1521 = vmatpush1.msra.mxu0 %v1007
        %1522 = vmatprep.subr.mxu0 %v1010
        %1523 = vmatpush1.msra.mxu0 %v1009
        %1524 = vmatprep.subr.mxu0 %v1012
        %1525 = vmatpush1.msra.mxu0 %v1011
        %1526 = vmatprep.subr.mxu0 %v1014
        %1527 = vmatpush1.msra.mxu0 %v1013
        %1528 = vmatprep.subr.mxu0 %v1016
        %1529 = vmatpush1.msra.mxu0 %v1015
        %1530 = vmatprep.subr.mxu0 %v1018
        %1531 = vmatpush1.msra.mxu0 %v1017
        %1532 = vmatprep.subr.mxu0 %v1020
        %1533 = vmatpush1.msra.mxu0 %v1019
        %1534 = vmatprep.subr.mxu0 %v1022
        %1535 = vmatpush1.msra.mxu0 %v1021
        %1536 = vmatprep.subr.mxu0 %v1024
        %1537 = vmatpush1.msra.mxu0 %v1023
        %1538 = vmatprep.subr.mxu0 %v1026
        %1539 = vmatpush1.msra.mxu0 %v1025
        %1540 = vmatprep.subr.mxu0 %v1028
        %1541 = vmatpush1.msra.mxu0 %v1027
        %1542 = vmatprep.subr.mxu0 %v1030
        %1543 = vmatpush1.msra.mxu0 %v1029
        %1544 = vmatprep.subr.mxu0 %v1032
        %1545 = vmatpush1.msra.mxu0 %v1031
        %1546 = vmatprep.mubr.f32.mxu0 %v1100
        %1547 = vmatmul.mubr.f32.gmra.mrb[0].mxu0 %v1099
        %v1548 = vpop.f32.mrb[0].mxu0
        %v1549 = vadd.f32 %v1292, %v1548
        %v1550 = vpop.f32.mrb[0].mxu0
        %v1551 = vadd.f32 %v1294, %v1550
        %1552 = vmatprep.mubr.f32.mxu0 %v1104
        %1553 = vmatmul.mubr.f32.gmra.mrb[0].mxu0 %v1103
        %v1554 = vpop.f32.mrb[0].mxu0
        %v1555 = vadd.f32 %v1298, %v1554
        %v1556 = vpop.f32.mrb[0].mxu0
        %v1557 = vadd.f32 %v1300, %v1556
        %1558 = vmatprep.mubr.f32.mxu0 %v1108
        %1559 = vmatmul.mubr.f32.gmra.mrb[0].mxu0 %v1107
        %v1560 = vpop.f32.mrb[0].mxu0
        %v1561 = vadd.f32 %v1304, %v1560
        %v1562 = vpop.f32.mrb[0].mxu0
        %v1563 = vadd.f32 %v1306, %v1562
        %1564 = vmatprep.mubr.f32.mxu0 %v1112
        %1565 = vmatmul.mubr.f32.gmra.mrb[0].mxu0 %v1111
        %v1566 = vpop.f32.mrb[0].mxu0
        %v1567 = vadd.f32 %v1310, %v1566
        %v1568 = vpop.f32.mrb[0].mxu0
        %v1569 = vadd.f32 %v1312, %v1568
        %1570 = vmatprep.mubr.f32.mxu0 %v1116
        %1571 = vmatmul.mubr.f32.gmra.mrb[0].mxu0 %v1115
        %v1572 = vpop.f32.mrb[0].mxu0
        %v1573 = vadd.f32 %v1316, %v1572
        %v1574 = vpop.f32.mrb[0].mxu0
        %v1575 = vadd.f32 %v1318, %v1574
        %1576 = vmatprep.mubr.f32.mxu0 %v1120
        %1577 = vmatmul.mubr.f32.gmra.mrb[0].mxu0 %v1119
        %v1578 = vpop.f32.mrb[0].mxu0
        %v1579 = vadd.f32 %v1322, %v1578
        %v1580 = vpop.f32.mrb[0].mxu0
        %v1581 = vadd.f32 %v1324, %v1580
        %1582 = vmatprep.mubr.f32.mxu0 %v1124
        %1583 = vmatmul.mubr.f32.gmra.mrb[0].mxu0 %v1123
        %v1584 = vpop.f32.mrb[0].mxu0
        %v1585 = vadd.f32 %v1328, %v1584
        %v1586 = vpop.f32.mrb[0].mxu0
        %v1587 = vadd.f32 %v1330, %v1586
        %1588 = vmatprep.mubr.f32.mxu0 %v1128
        %1589 = vmatmul.mubr.f32.gmra.mrb[0].mxu0 %v1127
        %v1590 = vpop.f32.mrb[0].mxu0
        %v1591 = vadd.f32 %v1334, %v1590
        %v1592 = vpop.f32.mrb[0].mxu0
        %v1593 = vadd.f32 %v1336, %v1592
        %1594 = vmatprep.mubr.f32.mxu0 %v1132
        %1595 = vmatmul.mubr.f32.gmra.mrb[0].mxu0 %v1131
        %v1596 = vpop.f32.mrb[0].mxu0
        %v1597 = vadd.f32 %v1340, %v1596
        %v1598 = vpop.f32.mrb[0].mxu0
        %v1599 = vadd.f32 %v1342, %v1598
        %1600 = vmatprep.mubr.f32.mxu0 %v1136
        %1601 = vmatmul.mubr.f32.gmra.mrb[0].mxu0 %v1135
        %v1602 = vpop.f32.mrb[0].mxu0
        %v1603 = vadd.f32 %v1346, %v1602
        %v1604 = vpop.f32.mrb[0].mxu0
        %v1605 = vadd.f32 %v1348, %v1604
        %1606 = vmatprep.mubr.f32.mxu0 %v1140
        %1607 = vmatmul.mubr.f32.gmra.mrb[0].mxu0 %v1139
        %v1608 = vpop.f32.mrb[0].mxu0
        %v1609 = vadd.f32 %v1352, %v1608
        %v1610 = vpop.f32.mrb[0].mxu0
        %v1611 = vadd.f32 %v1354, %v1610
        %1612 = vmatprep.mubr.f32.mxu0 %v1144
        %1613 = vmatmul.mubr.f32.gmra.mrb[0].mxu0 %v1143
        %v1614 = vpop.f32.mrb[0].mxu0
        %v1615 = vadd.f32 %v1358, %v1614
        %v1616 = vpop.f32.mrb[0].mxu0
        %v1617 = vadd.f32 %v1360, %v1616
        %1618 = vmatprep.mubr.f32.mxu0 %v1148
        %1619 = vmatmul.mubr.f32.gmra.mrb[0].mxu0 %v1147
        %v1620 = vpop.f32.mrb[0].mxu0
        %v1621 = vadd.f32 %v1364, %v1620
        %v1622 = vpop.f32.mrb[0].mxu0
        %v1623 = vadd.f32 %v1366, %v1622
        %1624 = vmatprep.mubr.f32.mxu0 %v1152
        %1625 = vmatmul.mubr.f32.gmra.mrb[0].mxu0 %v1151
        %v1626 = vpop.f32.mrb[0].mxu0
        %v1627 = vadd.f32 %v1370, %v1626
        %v1628 = vpop.f32.mrb[0].mxu0
        %v1629 = vadd.f32 %v1372, %v1628
        %1630 = vmatprep.mubr.f32.mxu0 %v1156
        %1631 = vmatmul.mubr.f32.gmra.mrb[0].mxu0 %v1155
        %v1632 = vpop.f32.mrb[0].mxu0
        %v1633 = vadd.f32 %v1376, %v1632
        %v1634 = vpop.f32.mrb[0].mxu0
        %v1635 = vadd.f32 %v1378, %v1634
        %1636 = vmatprep.mubr.f32.mxu0 %v1160
        %1637 = vmatmul.mubr.f32.gmra.mrb[0].mxu0 %v1159
        %v1638 = vpop.f32.mrb[0].mxu0
        %v1639 = vadd.f32 %v1382, %v1638
        %v1640 = vpop.f32.mrb[0].mxu0
        %v1641 = vadd.f32 %v1384, %v1640
        %1642 = vmatprep.mubr.f32.mxu0 %v1164
        %1643 = vmatmul.mubr.f32.gmra.mrb[0].mxu0 %v1163
        %v1644 = vpop.f32.mrb[0].mxu0
        %v1645 = vadd.f32 %v1388, %v1644
        %v1646 = vpop.f32.mrb[0].mxu0
        %v1647 = vadd.f32 %v1390, %v1646
        %1648 = vmatprep.mubr.f32.mxu0 %v1168
        %1649 = vmatmul.mubr.f32.gmra.mrb[0].mxu0 %v1167
        %v1650 = vpop.f32.mrb[0].mxu0
        %v1651 = vadd.f32 %v1394, %v1650
        %v1652 = vpop.f32.mrb[0].mxu0
        %v1653 = vadd.f32 %v1396, %v1652
        %1654 = vmatprep.mubr.f32.mxu0 %v1172
        %1655 = vmatmul.mubr.f32.gmra.mrb[0].mxu0 %v1171
        %v1656 = vpop.f32.mrb[0].mxu0
        %v1657 = vadd.f32 %v1400, %v1656
        %v1658 = vpop.f32.mrb[0].mxu0
        %v1659 = vadd.f32 %v1402, %v1658
        %1660 = vmatprep.mubr.f32.mxu0 %v1176
        %1661 = vmatmul.mubr.f32.gmra.mrb[0].mxu0 %v1175
        %v1662 = vpop.f32.mrb[0].mxu0
        %v1663 = vadd.f32 %v1406, %v1662
        %v1664 = vpop.f32.mrb[0].mxu0
        %v1665 = vadd.f32 %v1408, %v1664
        %1666 = vmatprep.mubr.f32.mxu0 %v1180
        %1667 = vmatmul.mubr.f32.gmra.mrb[0].mxu0 %v1179
        %v1668 = vpop.f32.mrb[0].mxu0
        %v1669 = vadd.f32 %v1412, %v1668
        %v1670 = vpop.f32.mrb[0].mxu0
        %v1671 = vadd.f32 %v1414, %v1670
        %1672 = vmatprep.mubr.f32.mxu0 %v1184
        %1673 = vmatmul.mubr.f32.gmra.mrb[0].mxu0 %v1183
        %v1674 = vpop.f32.mrb[0].mxu0
        %v1675 = vadd.f32 %v1418, %v1674
        %v1676 = vpop.f32.mrb[0].mxu0
        %v1677 = vadd.f32 %v1420, %v1676
        %1678 = vmatprep.mubr.f32.mxu0 %v1188
        %1679 = vmatmul.mubr.f32.gmra.mrb[0].mxu0 %v1187
        %v1680 = vpop.f32.mrb[0].mxu0
        %v1681 = vadd.f32 %v1424, %v1680
        %v1682 = vpop.f32.mrb[0].mxu0
        %v1683 = vadd.f32 %v1426, %v1682
        %1684 = vmatprep.mubr.f32.mxu0 %v1192
        %1685 = vmatmul.mubr.f32.gmra.mrb[0].mxu0 %v1191
        %v1686 = vpop.f32.mrb[0].mxu0
        %v1687 = vadd.f32 %v1430, %v1686
        %v1688 = vpop.f32.mrb[0].mxu0
        %v1689 = vadd.f32 %v1432, %v1688
        %1690 = vmatprep.mubr.f32.mxu0 %v1196
        %1691 = vmatmul.mubr.f32.gmra.mrb[0].mxu0 %v1195
        %v1692 = vpop.f32.mrb[0].mxu0
        %v1693 = vadd.f32 %v1436, %v1692
        %v1694 = vpop.f32.mrb[0].mxu0
        %v1695 = vadd.f32 %v1438, %v1694
        %1696 = vmatprep.mubr.f32.mxu0 %v1200
        %1697 = vmatmul.mubr.f32.gmra.mrb[0].mxu0 %v1199
        %v1698 = vpop.f32.mrb[0].mxu0
        %v1699 = vadd.f32 %v1442, %v1698
        %v1700 = vpop.f32.mrb[0].mxu0
        %v1701 = vadd.f32 %v1444, %v1700
        %1702 = vmatprep.mubr.f32.mxu0 %v1204
        %1703 = vmatmul.mubr.f32.gmra.mrb[0].mxu0 %v1203
        %v1704 = vpop.f32.mrb[0].mxu0
        %v1705 = vadd.f32 %v1448, %v1704
        %v1706 = vpop.f32.mrb[0].mxu0
        %v1707 = vadd.f32 %v1450, %v1706
        %1708 = vmatprep.mubr.f32.mxu0 %v1208
        %1709 = vmatmul.mubr.f32.gmra.mrb[0].mxu0 %v1207
        %v1710 = vpop.f32.mrb[0].mxu0
        %v1711 = vadd.f32 %v1454, %v1710
        %v1712 = vpop.f32.mrb[0].mxu0
        %v1713 = vadd.f32 %v1456, %v1712
        %1714 = vmatprep.mubr.f32.mxu0 %v1212
        %1715 = vmatmul.mubr.f32.gmra.mrb[0].mxu0 %v1211
        %v1716 = vpop.f32.mrb[0].mxu0
        %v1717 = vadd.f32 %v1460, %v1716
        %v1718 = vpop.f32.mrb[0].mxu0
        %v1719 = vadd.f32 %v1462, %v1718
        %1720 = vmatprep.mubr.f32.mxu0 %v1216
        %1721 = vmatmul.mubr.f32.gmra.mrb[0].mxu0 %v1215
        %v1722 = vpop.f32.mrb[0].mxu0
        %v1723 = vadd.f32 %v1466, %v1722
        %v1724 = vpop.f32.mrb[0].mxu0
        %v1725 = vadd.f32 %v1468, %v1724
        %1726 = vmatprep.mubr.f32.mxu0 %v1220
        %1727 = vmatmul.mubr.f32.gmra.mrb[0].mxu0 %v1219
        %v1728 = vpop.f32.mrb[0].mxu0
        %v1729 = vadd.f32 %v1472, %v1728
        %v1730 = vpop.f32.mrb[0].mxu0
        %v1731 = vadd.f32 %v1474, %v1730
        %1732 = vmatprep.mubr.f32.mxu0 %v1224
        %1733 = vmatmul.mubr.f32.gmra.mrb[0].mxu0 %v1223
        %v1734 = vpop.f32.mrb[0].mxu0
        %v1735 = vadd.f32 %v1478, %v1734
        %v1736 = vpop.f32.mrb[0].mxu0
        %v1737 = vadd.f32 %v1480, %v1736
        %1738 = vdwg.mxu0
        %v1739 = vadd.f32 %v1033, %v1549
        %v1740 = vadd.f32 %v1034, %v1551
        %v1741 = vadd.f32 %v1035, %v1555
        %v1742 = vadd.f32 %v1036, %v1557
        %v1743 = vadd.f32 %v1037, %v1561
        %v1744 = vadd.f32 %v1038, %v1563
        %v1745 = vadd.f32 %v1039, %v1567
        %v1746 = vadd.f32 %v1040, %v1569
        %v1747 = vadd.f32 %v1041, %v1573
        %v1748 = vadd.f32 %v1042, %v1575
        %v1749 = vadd.f32 %v1043, %v1579
        %v1750 = vadd.f32 %v1044, %v1581
        %v1751 = vadd.f32 %v1045, %v1585
        %v1752 = vadd.f32 %v1046, %v1587
        %v1753 = vadd.f32 %v1047, %v1591
        %v1754 = vadd.f32 %v1048, %v1593
        %v1755 = vadd.f32 %v1049, %v1597
        %v1756 = vadd.f32 %v1050, %v1599
        %v1757 = vadd.f32 %v1051, %v1603
        %v1758 = vadd.f32 %v1052, %v1605
        %v1759 = vadd.f32 %v1053, %v1609
        %v1760 = vadd.f32 %v1054, %v1611
        %v1761 = vadd.f32 %v1055, %v1615
        %v1762 = vadd.f32 %v1056, %v1617
        %v1763 = vadd.f32 %v1057, %v1621
        %v1764 = vadd.f32 %v1058, %v1623
        %v1765 = vadd.f32 %v1059, %v1627
        %v1766 = vadd.f32 %v1060, %v1629
        %v1767 = vadd.f32 %v1061, %v1633
        %v1768 = vadd.f32 %v1062, %v1635
        %v1769 = vadd.f32 %v1063, %v1639
        %v1770 = vadd.f32 %v1064, %v1641
        %v1771 = vadd.f32 %v1065, %v1645
        %v1772 = vadd.f32 %v1066, %v1647
        %v1773 = vadd.f32 %v1067, %v1651
        %v1774 = vadd.f32 %v1068, %v1653
        %v1775 = vadd.f32 %v1069, %v1657
        %v1776 = vadd.f32 %v1070, %v1659
        %v1777 = vadd.f32 %v1071, %v1663
        %v1778 = vadd.f32 %v1072, %v1665
        %v1779 = vadd.f32 %v1073, %v1669
        %v1780 = vadd.f32 %v1074, %v1671
        %v1781 = vadd.f32 %v1075, %v1675
        %v1782 = vadd.f32 %v1076, %v1677
        %v1783 = vadd.f32 %v1077, %v1681
        %v1784 = vadd.f32 %v1078, %v1683
        %v1785 = vadd.f32 %v1079, %v1687
        %v1786 = vadd.f32 %v1080, %v1689
        %v1787 = vadd.f32 %v1081, %v1693
        %v1788 = vadd.f32 %v1082, %v1695
        %v1789 = vadd.f32 %v1083, %v1699
        %v1790 = vadd.f32 %v1084, %v1701
        %v1791 = vadd.f32 %v1085, %v1705
        %v1792 = vadd.f32 %v1086, %v1707
        %v1793 = vadd.f32 %v1087, %v1711
        %v1794 = vadd.f32 %v1088, %v1713
        %v1795 = vadd.f32 %v1089, %v1717
        %v1796 = vadd.f32 %v1090, %v1719
        %v1797 = vadd.f32 %v1091, %v1723
        %v1798 = vadd.f32 %v1092, %v1725
        %v1799 = vadd.f32 %v1093, %v1729
        %v1800 = vadd.f32 %v1094, %v1731
        %v1801 = vadd.f32 %v1095, %v1735
        %v1802 = vadd.f32 %v1096, %v1737
        %1803 = vst [vmem:[#allocation2] sm:$0xff] %v1739
        %1804 = vst [vmem:[#allocation2 + $0x8] sm:$0xff] %v1740
        %1805 = vst [vmem:[#allocation2 + $0x10] sm:$0xff] %v1741
        %1806 = vst [vmem:[#allocation2 + $0x18] sm:$0xff] %v1742
        %1807 = vst [vmem:[#allocation2 + $0x20] sm:$0xff] %v1743
        %1808 = vst [vmem:[#allocation2 + $0x28] sm:$0xff] %v1744
        %1809 = vst [vmem:[#allocation2 + $0x30] sm:$0xff] %v1745
        %1810 = vst [vmem:[#allocation2 + $0x38] sm:$0xff] %v1746
        %1811 = vst [vmem:[#allocation2 + $0x40] sm:$0xff] %v1747
        %1812 = vst [vmem:[#allocation2 + $0x48] sm:$0xff] %v1748
        %1813 = vst [vmem:[#allocation2 + $0x50] sm:$0xff] %v1749
        %1814 = vst [vmem:[#allocation2 + $0x58] sm:$0xff] %v1750
        %1815 = vst [vmem:[#allocation2 + $0x60] sm:$0xff] %v1751
        %1816 = vst [vmem:[#allocation2 + $0x68] sm:$0xff] %v1752
        %1817 = vst [vmem:[#allocation2 + $0x70] sm:$0xff] %v1753
        %1818 = vst [vmem:[#allocation2 + $0x78] sm:$0xff] %v1754
        %1819 = vst [vmem:[#allocation2 + $0x80] sm:$0xff] %v1755
        %1820 = vst [vmem:[#allocation2 + $0x88] sm:$0xff] %v1756
        %1821 = vst [vmem:[#allocation2 + $0x90] sm:$0xff] %v1757
        %1822 = vst [vmem:[#allocation2 + $0x98] sm:$0xff] %v1758
        %1823 = vst [vmem:[#allocation2 + $0xa0] sm:$0xff] %v1759
        %1824 = vst [vmem:[#allocation2 + $0xa8] sm:$0xff] %v1760
        %1825 = vst [vmem:[#allocation2 + $0xb0] sm:$0xff] %v1761
        %1826 = vst [vmem:[#allocation2 + $0xb8] sm:$0xff] %v1762
        %1827 = vst [vmem:[#allocation2 + $0xc0] sm:$0xff] %v1763
        %1828 = vst [vmem:[#allocation2 + $0xc8] sm:$0xff] %v1764
        %1829 = vst [vmem:[#allocation2 + $0xd0] sm:$0xff] %v1765
        %1830 = vst [vmem:[#allocation2 + $0xd8] sm:$0xff] %v1766
        %1831 = vst [vmem:[#allocation2 + $0xe0] sm:$0xff] %v1767
        %1832 = vst [vmem:[#allocation2 + $0xe8] sm:$0xff] %v1768
        %1833 = vst [vmem:[#allocation2 + $0xf0] sm:$0xff] %v1769
        %1834 = vst [vmem:[#allocation2 + $0xf8] sm:$0xff] %v1770
        %1835 = vst [vmem:[#allocation2 + $0x100] sm:$0xff] %v1771
        %1836 = vst [vmem:[#allocation2 + $0x108] sm:$0xff] %v1772
        %1837 = vst [vmem:[#allocation2 + $0x110] sm:$0xff] %v1773
        %1838 = vst [vmem:[#allocation2 + $0x118] sm:$0xff] %v1774
        %1839 = vst [vmem:[#allocation2 + $0x120] sm:$0xff] %v1775
        %1840 = vst [vmem:[#allocation2 + $0x128] sm:$0xff] %v1776
        %1841 = vst [vmem:[#allocation2 + $0x130] sm:$0xff] %v1777
        %1842 = vst [vmem:[#allocation2 + $0x138] sm:$0xff] %v1778
        %1843 = vst [vmem:[#allocation2 + $0x140] sm:$0xff] %v1779
        %1844 = vst [vmem:[#allocation2 + $0x148] sm:$0xff] %v1780
        %1845 = vst [vmem:[#allocation2 + $0x150] sm:$0xff] %v1781
        %1846 = vst [vmem:[#allocation2 + $0x158] sm:$0xff] %v1782
        %1847 = vst [vmem:[#allocation2 + $0x160] sm:$0xff] %v1783
        %1848 = vst [vmem:[#allocation2 + $0x168] sm:$0xff] %v1784
        %1849 = vst [vmem:[#allocation2 + $0x170] sm:$0xff] %v1785
        %1850 = vst [vmem:[#allocation2 + $0x178] sm:$0xff] %v1786
        %1851 = vst [vmem:[#allocation2 + $0x180] sm:$0xff] %v1787
        %1852 = vst [vmem:[#allocation2 + $0x188] sm:$0xff] %v1788
        %1853 = vst [vmem:[#allocation2 + $0x190] sm:$0xff] %v1789
        %1854 = vst [vmem:[#allocation2 + $0x198] sm:$0xff] %v1790
        %1855 = vst [vmem:[#allocation2 + $0x1a0] sm:$0xff] %v1791
        %1856 = vst [vmem:[#allocation2 + $0x1a8] sm:$0xff] %v1792
        %1857 = vst [vmem:[#allocation2 + $0x1b0] sm:$0xff] %v1793
        %1858 = vst [vmem:[#allocation2 + $0x1b8] sm:$0xff] %v1794
        %1859 = vst [vmem:[#allocation2 + $0x1c0] sm:$0xff] %v1795
        %1860 = vst [vmem:[#allocation2 + $0x1c8] sm:$0xff] %v1796
        %1861 = vst [vmem:[#allocation2 + $0x1d0] sm:$0xff] %v1797
        %1862 = vst [vmem:[#allocation2 + $0x1d8] sm:$0xff] %v1798
        %1863 = vst [vmem:[#allocation2 + $0x1e0] sm:$0xff] %v1799
        %1864 = vst [vmem:[#allocation2 + $0x1e8] sm:$0xff] %v1800
        %1865 = vst [vmem:[#allocation2 + $0x1f0] sm:$0xff] %v1801
        %1866 = vst [vmem:[#allocation2 + $0x1f8] sm:$0xff] %v1802
        // Predicated region
        $region53: #{tpu_custom_call.1} parent=35 // pred_check
          %p1867 = pneg %p321
        $region54: #{tpu_custom_call.1} parent=35 // pred_check_branch
          %1869 = sbr.rel (%p1867) target = $region56
        $region55: #{tpu_custom_call.1} parent=35 // pred_region
          %v1870 = vld [vmem:[#allocation2] sm:$0xff]
          %v1871 = vld [vmem:[#allocation2 + $0x8] sm:$0xff]
          %v1872 = vld [vmem:[#allocation2 + $0x10] sm:$0xff]
          %v1873 = vld [vmem:[#allocation2 + $0x18] sm:$0xff]
          %v1874 = vld [vmem:[#allocation2 + $0x20] sm:$0xff]
          %v1875 = vld [vmem:[#allocation2 + $0x28] sm:$0xff]
          %v1876 = vld [vmem:[#allocation2 + $0x30] sm:$0xff]
          %v1877 = vld [vmem:[#allocation2 + $0x38] sm:$0xff]
          %v1878 = vld [vmem:[#allocation2 + $0x40] sm:$0xff]
          %v1879 = vld [vmem:[#allocation2 + $0x48] sm:$0xff]
          %v1880 = vld [vmem:[#allocation2 + $0x50] sm:$0xff]
          %v1881 = vld [vmem:[#allocation2 + $0x58] sm:$0xff]
          %v1882 = vld [vmem:[#allocation2 + $0x60] sm:$0xff]
          %v1883 = vld [vmem:[#allocation2 + $0x68] sm:$0xff]
          %v1884 = vld [vmem:[#allocation2 + $0x70] sm:$0xff]
          %v1885 = vld [vmem:[#allocation2 + $0x78] sm:$0xff]
          %v1886 = vld [vmem:[#allocation2 + $0x80] sm:$0xff]
          %v1887 = vld [vmem:[#allocation2 + $0x88] sm:$0xff]
          %v1888 = vld [vmem:[#allocation2 + $0x90] sm:$0xff]
          %v1889 = vld [vmem:[#allocation2 + $0x98] sm:$0xff]
          %v1890 = vld [vmem:[#allocation2 + $0xa0] sm:$0xff]
          %v1891 = vld [vmem:[#allocation2 + $0xa8] sm:$0xff]
          %v1892 = vld [vmem:[#allocation2 + $0xb0] sm:$0xff]
          %v1893 = vld [vmem:[#allocation2 + $0xb8] sm:$0xff]
          %v1894 = vld [vmem:[#allocation2 + $0xc0] sm:$0xff]
          %v1895 = vld [vmem:[#allocation2 + $0xc8] sm:$0xff]
          %v1896 = vld [vmem:[#allocation2 + $0xd0] sm:$0xff]
          %v1897 = vld [vmem:[#allocation2 + $0xd8] sm:$0xff]
          %v1898 = vld [vmem:[#allocation2 + $0xe0] sm:$0xff]
          %v1899 = vld [vmem:[#allocation2 + $0xe8] sm:$0xff]
          %v1900 = vld [vmem:[#allocation2 + $0xf0] sm:$0xff]
          %v1901 = vld [vmem:[#allocation2 + $0xf8] sm:$0xff]
          %v1902 = vld [vmem:[#allocation2 + $0x100] sm:$0xff]
          %v1903 = vld [vmem:[#allocation2 + $0x108] sm:$0xff]
          %v1904 = vld [vmem:[#allocation2 + $0x110] sm:$0xff]
          %v1905 = vld [vmem:[#allocation2 + $0x118] sm:$0xff]
          %v1906 = vld [vmem:[#allocation2 + $0x120] sm:$0xff]
          %v1907 = vld [vmem:[#allocation2 + $0x128] sm:$0xff]
          %v1908 = vld [vmem:[#allocation2 + $0x130] sm:$0xff]
          %v1909 = vld [vmem:[#allocation2 + $0x138] sm:$0xff]
          %v1910 = vld [vmem:[#allocation2 + $0x140] sm:$0xff]
          %v1911 = vld [vmem:[#allocation2 + $0x148] sm:$0xff]
          %v1912 = vld [vmem:[#allocation2 + $0x150] sm:$0xff]
          %v1913 = vld [vmem:[#allocation2 + $0x158] sm:$0xff]
          %v1914 = vld [vmem:[#allocation2 + $0x160] sm:$0xff]
          %v1915 = vld [vmem:[#allocation2 + $0x168] sm:$0xff]
          %v1916 = vld [vmem:[#allocation2 + $0x170] sm:$0xff]
          %v1917 = vld [vmem:[#allocation2 + $0x178] sm:$0xff]
          %v1918 = vld [vmem:[#allocation2 + $0x180] sm:$0xff]
          %v1919 = vld [vmem:[#allocation2 + $0x188] sm:$0xff]
          %v1920 = vld [vmem:[#allocation2 + $0x190] sm:$0xff]
          %v1921 = vld [vmem:[#allocation2 + $0x198] sm:$0xff]
          %v1922 = vld [vmem:[#allocation2 + $0x1a0] sm:$0xff]
          %v1923 = vld [vmem:[#allocation2 + $0x1a8] sm:$0xff]
          %v1924 = vld [vmem:[#allocation2 + $0x1b0] sm:$0xff]
          %v1925 = vld [vmem:[#allocation2 + $0x1b8] sm:$0xff]
          %v1926 = vld [vmem:[#allocation2 + $0x1c0] sm:$0xff]
          %v1927 = vld [vmem:[#allocation2 + $0x1c8] sm:$0xff]
          %v1928 = vld [vmem:[#allocation2 + $0x1d0] sm:$0xff]
          %v1929 = vld [vmem:[#allocation2 + $0x1d8] sm:$0xff]
          %v1930 = vld [vmem:[#allocation2 + $0x1e0] sm:$0xff]
          %v1931 = vld [vmem:[#allocation2 + $0x1e8] sm:$0xff]
          %v1932 = vld [vmem:[#allocation2 + $0x1f0] sm:$0xff]
          %v1933 = vld [vmem:[#allocation2 + $0x1f8] sm:$0xff]
          %1934 = vst [vmem:[%s312] sm:$0xff] %v1870
          %1935 = vst [vmem:[%s312 + $0x8] sm:$0xff] %v1871
          %1936 = vst [vmem:[%s312 + $0x10] sm:$0xff] %v1872
          %1937 = vst [vmem:[%s312 + $0x18] sm:$0xff] %v1873
          %1938 = vst [vmem:[%s312 + $0x20] sm:$0xff] %v1874
          %1939 = vst [vmem:[%s312 + $0x28] sm:$0xff] %v1875
          %1940 = vst [vmem:[%s312 + $0x30] sm:$0xff] %v1876
          %1941 = vst [vmem:[%s312 + $0x38] sm:$0xff] %v1877
          %1942 = vst [vmem:[%s312 + $0x40] sm:$0xff] %v1878
          %1943 = vst [vmem:[%s312 + $0x48] sm:$0xff] %v1879
          %1944 = vst [vmem:[%s312 + $0x50] sm:$0xff] %v1880
          %1945 = vst [vmem:[%s312 + $0x58] sm:$0xff] %v1881
          %1946 = vst [vmem:[%s312 + $0x60] sm:$0xff] %v1882
          %1947 = vst [vmem:[%s312 + $0x68] sm:$0xff] %v1883
          %1948 = vst [vmem:[%s312 + $0x70] sm:$0xff] %v1884
          %1949 = vst [vmem:[%s312 + $0x78] sm:$0xff] %v1885
          %1950 = vst [vmem:[%s312 + $0x80] sm:$0xff] %v1886
          %1951 = vst [vmem:[%s312 + $0x88] sm:$0xff] %v1887
          %1952 = vst [vmem:[%s312 + $0x90] sm:$0xff] %v1888
          %1953 = vst [vmem:[%s312 + $0x98] sm:$0xff] %v1889
          %1954 = vst [vmem:[%s312 + $0xa0] sm:$0xff] %v1890
          %1955 = vst [vmem:[%s312 + $0xa8] sm:$0xff] %v1891
          %1956 = vst [vmem:[%s312 + $0xb0] sm:$0xff] %v1892
          %1957 = vst [vmem:[%s312 + $0xb8] sm:$0xff] %v1893
          %1958 = vst [vmem:[%s312 + $0xc0] sm:$0xff] %v1894
          %1959 = vst [vmem:[%s312 + $0xc8] sm:$0xff] %v1895
          %1960 = vst [vmem:[%s312 + $0xd0] sm:$0xff] %v1896
          %1961 = vst [vmem:[%s312 + $0xd8] sm:$0xff] %v1897
          %1962 = vst [vmem:[%s312 + $0xe0] sm:$0xff] %v1898
          %1963 = vst [vmem:[%s312 + $0xe8] sm:$0xff] %v1899
          %1964 = vst [vmem:[%s312 + $0xf0] sm:$0xff] %v1900
          %1965 = vst [vmem:[%s312 + $0xf8] sm:$0xff] %v1901
          %1966 = vst [vmem:[%s312 + $0x100] sm:$0xff] %v1902
          %1967 = vst [vmem:[%s312 + $0x108] sm:$0xff] %v1903
          %1968 = vst [vmem:[%s312 + $0x110] sm:$0xff] %v1904
          %1969 = vst [vmem:[%s312 + $0x118] sm:$0xff] %v1905
          %1970 = vst [vmem:[%s312 + $0x120] sm:$0xff] %v1906
          %1971 = vst [vmem:[%s312 + $0x128] sm:$0xff] %v1907
          %1972 = vst [vmem:[%s312 + $0x130] sm:$0xff] %v1908
          %1973 = vst [vmem:[%s312 + $0x138] sm:$0xff] %v1909
          %1974 = vst [vmem:[%s312 + $0x140] sm:$0xff] %v1910
          %1975 = vst [vmem:[%s312 + $0x148] sm:$0xff] %v1911
          %1976 = vst [vmem:[%s312 + $0x150] sm:$0xff] %v1912
          %1977 = vst [vmem:[%s312 + $0x158] sm:$0xff] %v1913
          %1978 = vst [vmem:[%s312 + $0x160] sm:$0xff] %v1914
          %1979 = vst [vmem:[%s312 + $0x168] sm:$0xff] %v1915
          %1980 = vst [vmem:[%s312 + $0x170] sm:$0xff] %v1916
          %1981 = vst [vmem:[%s312 + $0x178] sm:$0xff] %v1917
          %1982 = vst [vmem:[%s312 + $0x180] sm:$0xff] %v1918
          %1983 = vst [vmem:[%s312 + $0x188] sm:$0xff] %v1919
          %1984 = vst [vmem:[%s312 + $0x190] sm:$0xff] %v1920
          %1985 = vst [vmem:[%s312 + $0x198] sm:$0xff] %v1921
          %1986 = vst [vmem:[%s312 + $0x1a0] sm:$0xff] %v1922
          %1987 = vst [vmem:[%s312 + $0x1a8] sm:$0xff] %v1923
          %1988 = vst [vmem:[%s312 + $0x1b0] sm:$0xff] %v1924
          %1989 = vst [vmem:[%s312 + $0x1b8] sm:$0xff] %v1925
          %1990 = vst [vmem:[%s312 + $0x1c0] sm:$0xff] %v1926
          %1991 = vst [vmem:[%s312 + $0x1c8] sm:$0xff] %v1927
          %1992 = vst [vmem:[%s312 + $0x1d0] sm:$0xff] %v1928
          %1993 = vst [vmem:[%s312 + $0x1d8] sm:$0xff] %v1929
          %1994 = vst [vmem:[%s312 + $0x1e0] sm:$0xff] %v1930
          %1995 = vst [vmem:[%s312 + $0x1e8] sm:$0xff] %v1931
          %1996 = vst [vmem:[%s312 + $0x1f0] sm:$0xff] %v1932
          %1997 = vst [vmem:[%s312 + $0x1f8] sm:$0xff] %v1933
        $region56: #{tpu_custom_call.1} parent=35 // pred_fallthru
          _
        %s1998 = sand.u32 %s157, 1
        %s1999 = scalar_lea.sflag [#allocation6], %s1998
        %s2000 = sand.u32 %s157, 1
        %s2001 = smul.addr %s2000, 512
        %s2002 = scalar_lea.vmem [#allocation10], %s2001
        // Predicated region
        $region57: #{tpu_custom_call.1} parent=35 // pred_check
          %p2003 = pneg %p167
        $region58: #{tpu_custom_call.1} parent=35 // pred_check_branch
          %2005 = sbr.rel (%p2003) target = $region60
        $region59: #{tpu_custom_call.1} parent=35 // pred_region
          %s2006 = smul.u32 32, %s28
          %s2007 = smul.u32 2, %s29
          %s2009 = ssub.s32 8192, 8192
          %2010 = vsyncadd %s1999, %s2009
          %s2011 = smul.addr %s2006, 4
          %s2012 = sadd.s32 %s2007, %s2011
          %s2013 = smul.addr %s2012, 128
          %s2014 = scalar_lea.hbm %s4, %s2013
          %s2015 = sshll.u32 %s2002, 4
          %s2016 = int_to_ptr.vmem [resolvable:$true] %s2015
          %2021 = dma.vmem_to_hbm [thread:$0]  %s2016, 8192, %s2014, %s1999, 256, 512, 16
        $region60: #{tpu_custom_call.1} parent=35 // pred_fallthru
          _
      $region36: #{tpu_custom_call.1} parent=5 // pred_fallthru
        _
      %p2022 = scmp.le.s32.totalorder 2, %s18
      // Predicated region
      $region61: #{tpu_custom_call.1} parent=5 // pred_check
        %p2023 = pneg %p2022
      $region62: #{tpu_custom_call.1} parent=5 // pred_check_branch
        %2025 = sbr.rel (%p2023) target = $region64
      $region63: #{tpu_custom_call.1} parent=5 // pred_region
        %s2026 = ssub.s32 %s18, 2
        // Predicated region
        $region65: #{tpu_custom_call.1} parent=63 // pred_check
          %p2027 = pneg %p173
        $region66: #{tpu_custom_call.1} parent=63 // pred_check_branch
          %2029 = sbr.rel (%p2027) target = $region68
        $region67: #{tpu_custom_call.1} parent=63 // pred_region
          %s2030 = sand.u32 %s158, 1
          %s2031 = scalar_lea.sflag [#allocation6], %s2030
          %s2032 = sand.u32 %s158, 1
          %s2033 = smul.addr %s2032, 512
          %s2034 = scalar_lea.vmem [#allocation10], %s2033
          %2035 = dma.done %s2031, 8192
        $region68: #{tpu_custom_call.1} parent=63 // pred_fallthru
          _
      $region64: #{tpu_custom_call.1} parent=5 // pred_fallthru
        _
    $region6: #{tpu_custom_call.1} parent=1 // loop_footer
      %s22 = sadd.s32 1, %s18
    $region7: #{tpu_custom_call.1} parent=1 // loop_footer_branch
      %17 = sbr.rel target = $region3
    $region8: #{tpu_custom_call.1} parent=1 // loop_exit
      _
    %2036 = vsyncpa [#allocation5], 1
    %s2037 = scalar_lea.sflag [#allocation5], 1
    %2038 = vsyncpa %s2037, 1
    %2039 = vsyncpa [#allocation8], 1
    %s2040 = scalar_lea.sflag [#allocation8], 1
    %2041 = vsyncpa %s2040, 1
    %2042 = vsyncpa [#allocation6], 1
    %s2043 = scalar_lea.sflag [#allocation6], 1
    %2044 = vsyncpa %s2043, 1

</llo_original>
